<compile_context>
chip_gen: v6e
topology: v6e:2x2x1
jax: 0.10.0
libtpu: 0.0.40
codegen_flags: <defaults>
</compile_context>

<pallas_src>
import math
import functools

import numpy as np
import jax
import jax.numpy as jnp
from jax.experimental import pallas as pl
from jax.experimental.pallas import tpu as pltpu

_SUB = 8      # f32 sublane granularity
_LANE = 128   # lane granularity


def _pos_embed_sine_kernel(tab_y_ref, tab_x_ref, o_ref, *, num_pos_feats, th, tw):
    # o_ref:     (2F, th, tw)  output tile, channels leading (NCHW layout).
    # tab_y_ref: (F,  th, 1)   precomputed sin/cos rows for this h-tile.
    # tab_x_ref: (F,  1,  tw)  precomputed sin/cos cols for this w-tile.
    F = num_pos_feats
    o_ref[:F, :, :] = jnp.broadcast_to(tab_y_ref[...], (F, th, tw))  # lane-splat
    o_ref[F:, :, :] = jnp.broadcast_to(tab_x_ref[...], (F, th, tw))  # sublane-splat


def _make_tables(H, W, num_pos_feats, temperature, normalize, scale):
    """Trace-time (numpy float64) tables, exactly the PyTorch forward math.

    mask = F.interpolate(ones) == ones, so cumsum over rows/cols is just
    (row index + 1) / (col index + 1).
    """
    F = num_pos_feats
    eps = 1e-6
    rows = np.arange(1, H + 1, dtype=np.float64)
    cols = np.arange(1, W + 1, dtype=np.float64)
    if normalize:
        rows = rows / (H + eps) * scale
        cols = cols / (W + eps) * scale
    k = np.arange(F)
    dim_t = np.asarray(temperature, np.float64) ** (2.0 * (k // 2) / F)   # (F,)
    pos_y = rows[None, :] / dim_t[:, None]                                # (F, H)
    pos_x = cols[None, :] / dim_t[:, None]                                # (F, W)
    even = (k % 2 == 0)[:, None]
    tab_y = np.where(even, np.sin(pos_y), np.cos(pos_y)).astype(np.float32)
    tab_x = np.where(even, np.sin(pos_x), np.cos(pos_x)).astype(np.float32)
    return tab_y, tab_x


def _pick_tiles(H, W, C2):
    """Choose (th, tw) obeying the (8,128) block rule, ~<=2 MiB f32 output
    blocks, and >=2 grid tiles whenever H allows (v7x megacore sharding)."""
    if W % _LANE == 0 and W > 512:
        tw = 512
    else:
        tw = W                                   # equals full dim -> always legal
    n_w = pl.cdiv(W, tw)
    w_lanes = pl.cdiv(tw, _LANE) * _LANE

    if H <= _SUB:
        th = H                                   # equals full dim -> always legal
    else:
        budget = max(_SUB, (2 * 1024 * 1024) // (C2 * w_lanes * 4))
        th = min(H, budget)
        th = max(_SUB, (th // _SUB) * _SUB)
        if n_w == 1 and th >= H:
            # Single-tile grid would leave v7x's second TensorCore idle: split H.
            half = pl.cdiv(H, 2)
            th = max(_SUB, (half // _SUB) * _SUB)
    return th, tw


def position_embedding_sine(x, num_pos_feats=64, temperature=10000,
                            normalize=False, scale=None):
    """x: (B, C, H, W) NCHW.  Input values are unused (only the shape matters),
    exactly as in the PyTorch module.  Returns (B, 2*num_pos_feats, H, W) f32."""
    if scale is not None and not normalize:
        raise ValueError("normalize should be True if scale is passed")
    if scale is None:
        scale = 2 * math.pi

    B, _, H, W = x.shape
    F_ = int(num_pos_feats)
    C2 = 2 * F_

    tab_y, tab_x = _make_tables(H, W, F_, temperature, normalize, scale)
    tab_y = jnp.asarray(tab_y.reshape(F_, H, 1))
    tab_x = jnp.asarray(tab_x.reshape(F_, 1, W))

    th, tw = _pick_tiles(H, W, C2)
    grid = (pl.cdiv(H, th), pl.cdiv(W, tw))

    kernel = functools.partial(_pos_embed_sine_kernel,
                               num_pos_feats=F_, th=th, tw=tw)

    pos_chw = pl.pallas_call(
        kernel,
        out_shape=jax.ShapeDtypeStruct((C2, H, W), jnp.float32),
        grid=grid,
        in_specs=[
            pl.BlockSpec((F_, th, 1), lambda i, j: (0, i, 0)),   # tab_y h-tile
            pl.BlockSpec((F_, 1, tw), lambda i, j: (0, 0, j)),   # tab_x w-tile
        ],
        out_specs=pl.BlockSpec((C2, th, tw), lambda i, j: (0, i, j)),
        compiler_params=pltpu.CompilerParams(
            dimension_semantics=("parallel", "parallel")),
    )(tab_y, tab_x)

    # Batch-invariant result: broadcast, never recompute.  Under jit this
    # broadcast fuses into the consumer; use pos_chw[None] directly when a
    # materialized per-batch copy is not required.
    return jnp.broadcast_to(pos_chw.reshape(1, C2, H, W), (B, C2, H, W))


def _reference(x, num_pos_feats=64, temperature=10000, normalize=False, scale=None):
    """Pure-JAX transcription of the PyTorch forward (for verification)."""
    if scale is None:
        scale = 2 * math.pi
    B, _, H, W = x.shape
    mask = jnp.ones((B, H, W), jnp.float32)          # interpolate(ones) == ones
    y_embed = jnp.cumsum(mask, axis=1)
    x_embed = jnp.cumsum(mask, axis=2)
    if normalize:
        eps = 1e-6
        y_embed = y_embed / (y_embed[:, -1:, :] + eps) * scale
        x_embed = x_embed / (x_embed[:, :, -1:] + eps) * scale
    dim_t = jnp.arange(num_pos_feats, dtype=jnp.float32)
    dim_t = temperature ** (2 * jnp.floor(dim_t / 2) / num_pos_feats)
    pos_x = x_embed[..., None] / dim_t
    pos_y = y_embed[..., None] / dim_t
    pos_x = jnp.stack((jnp.sin(pos_x[..., 0::2]), jnp.cos(pos_x[..., 1::2])),
                      axis=4).reshape(B, H, W, -1)
    pos_y = jnp.stack((jnp.sin(pos_y[..., 0::2]), jnp.cos(pos_y[..., 1::2])),
                      axis=4).reshape(B, H, W, -1)
    pos = jnp.concatenate((pos_y, pos_x), axis=3).transpose(0, 3, 1, 2)
    return pos


if __name__ == "__main__":
    key = jax.random.PRNGKey(0)

    # Default (normalize=False) path, module-consistent shapes.
    x = jax.random.normal(key, (2, 4, 16, 16), dtype=jnp.float32)  # NCHW
    pos = jax.block_until_ready(position_embedding_sine(x))        # (2, 128, 16, 16)
    ref = jax.block_until_ready(_reference(x))
    assert pos.shape == (2, 128, 16, 16), pos.shape
    np.testing.assert_allclose(np.asarray(pos), np.asarray(ref), rtol=1e-5, atol=1e-5)

    # normalize=True path (per review: exercise it explicitly), non-square spatial.
    x2 = jax.random.normal(key, (1, 4, 16, 8), dtype=jnp.float32)
    pos2 = jax.block_until_ready(position_embedding_sine(x2, normalize=True))
    ref2 = jax.block_until_ready(_reference(x2, normalize=True))
    assert pos2.shape == (1, 128, 16, 8), pos2.shape
    np.testing.assert_allclose(np.asarray(pos2), np.asarray(ref2), rtol=1e-5, atol=1e-5)

    print("KERNEL_OK")
</pallas_src>

<mosaic_0001>
module attributes {stable_mosaic.version = 11 : i64} {
  func.func @_pos_embed_sine_kernel(%arg0: i32, %arg1: i32, %arg2: memref<64x8x1xf32, #tpu.memory_space<vmem>>, %arg3: memref<64x1x16xf32, #tpu.memory_space<vmem>>, %arg4: memref<128x8x16xf32, #tpu.memory_space<vmem>>) attributes {dimension_semantics = [#tpu.dimension_semantics<parallel>, #tpu.dimension_semantics<parallel>], iteration_bounds = array<i64: 2, 1>, scalar_prefetch = 0 : i64, scratch_operands = 0 : i64, tpu.core_type = #tpu.core_type<tc>, window_params = [{transform_indices = @transform_0, window_bounds = array<i64: 64, 8, 1>}, {transform_indices = @transform_1, window_bounds = array<i64: 64, 1, 16>}, {transform_indices = @transform_2, window_bounds = array<i64: 128, 8, 16>}]} {
    %c0 = arith.constant 0 : index
    %c0_0 = arith.constant 0 : index
    %c0_1 = arith.constant 0 : index
    %0 = vector.load %arg2[%c0, %c0_0, %c0_1] : memref<64x8x1xf32, #tpu.memory_space<vmem>>, vector<64x8x1xf32>
    %1 = vector.shape_cast %0 : vector<64x8x1xf32> to vector<64x8x1xf32>
    %2 = vector.broadcast %1 : vector<64x8x1xf32> to vector<64x8x16xf32>
    %c0_2 = arith.constant 0 : index
    %c0_3 = arith.constant 0 : index
    %c0_4 = arith.constant 0 : index
    %3 = vector.load %arg4[%c0_2, %c0_3, %c0_4] : memref<128x8x16xf32, #tpu.memory_space<vmem>>, vector<64x8x16xf32>
    tpu.vector_store %arg4[%c0_2, %c0_3, %c0_4], %2 {strides = array<i32>} : memref<128x8x16xf32, #tpu.memory_space<vmem>>, vector<64x8x16xf32>,
    %c0_5 = arith.constant 0 : index
    %c0_6 = arith.constant 0 : index
    %c0_7 = arith.constant 0 : index
    %4 = vector.load %arg3[%c0_5, %c0_6, %c0_7] : memref<64x1x16xf32, #tpu.memory_space<vmem>>, vector<64x1x16xf32>
    %5 = vector.shape_cast %4 : vector<64x1x16xf32> to vector<64x1x16xf32>
    %6 = vector.broadcast %5 : vector<64x1x16xf32> to vector<64x8x16xf32>
    %c64 = arith.constant 64 : index
    %c0_8 = arith.constant 0 : index
    %c0_9 = arith.constant 0 : index
    %7 = vector.load %arg4[%c64, %c0_8, %c0_9] : memref<128x8x16xf32, #tpu.memory_space<vmem>>, vector<64x8x16xf32>
    tpu.vector_store %arg4[%c64, %c0_8, %c0_9], %6 {strides = array<i32>} : memref<128x8x16xf32, #tpu.memory_space<vmem>>, vector<64x8x16xf32>,
    return
  }
  func.func @transform_0(%arg0: i32, %arg1: i32) -> (i32, i32, i32) {
    %c0_i32 = arith.constant 0 : i32
    %c0_i32_0 = arith.constant 0 : i32
    %c0_i32_1 = arith.constant 0 : i32
    return %c0_i32, %arg0, %c0_i32_0 : i32, i32, i32
  }
  func.func @transform_1(%arg0: i32, %arg1: i32) -> (i32, i32, i32) {
    %c0_i32 = arith.constant 0 : i32
    %c0_i32_0 = arith.constant 0 : i32
    %c0_i32_1 = arith.constant 0 : i32
    return %c0_i32, %c0_i32_0, %arg1 : i32, i32, i32
  }
  func.func @transform_2(%arg0: i32, %arg1: i32) -> (i32, i32, i32) {
    %c0_i32 = arith.constant 0 : i32
    %c0_i32_0 = arith.constant 0 : i32
    return %c0_i32, %arg0, %arg1 : i32, i32, i32
  }
}

</mosaic_0001>

<llo_original>
// kernel: tpu_custom_call.1
$region0: #{tpu_custom_call.1}
  #allocation0 [shape = 'u32[]', space=smem, size = 0x4, offset = 0x4, fixed_abs, tag = 'smem constant byte address 0x4 - core index']
  #allocation1 [shape = 'u32[144,128]{1,0:T(1,128)}', space=vmem, size = 0x12000, scoped, tag = 'internal scratch']
  %s0 = inlined_call_operand.vmem [shape: f32[64,16,1], index: 0, kind: input, shape index: {}]
  %s1 = inlined_call_operand.vmem [shape: f32[64,1,16], index: 1, kind: input, shape index: {}]
  %s2 = inlined_call_operand.vmem [shape: f32[128,16,16], index: 2, kind: output, shape index: {}]
  %s3 = sld [smem:[#allocation0]]
  $region113: #{tpu_custom_call.1} parent=0
    _
  %s5 = ssub.s32 1, %s3
  %s6 = scalar_select 0, %s5, %s3
  $region1: #{tpu_custom_call.1} parent=0
    #allocation2 [shape = 'u8[524288]{0}', space=vmem, size = 0x80000, scoped, tag = 'input window, operand 0']
    #allocation3 [shape = 'u8[1048576]{0}', space=vmem, size = 0x100000, scoped, tag = 'output window, operand 0']
    loop: start=0, step=1, limit=4
    $region2: #{tpu_custom_call.1} parent=1 // loop_pre_header
      _
    $region3: #{tpu_custom_call.1} parent=1 // loop_header
      %s8 = sphi 0, %s12
      %p9 = scmp.ge.s32.totalorder %s8, 4
      %s15 = sphi 0, %s27
      %s16 = sphi 0, %s23
      %s17 = sphi 0, %s15
      %s18 = sphi 0, %s16
      %s19 = sphi 0, %s17
      %s20 = sphi 0, %s18
      %s30 = sphi 0, %s32
      %s33 = sphi 0, %s30
      %s34 = sphi 0, %s33
      %s50 = sphi 0, %s34
      %s56 = sphi 0, %s58
      %s59 = sphi 0, %s56
      %s60 = sphi 0, %s59
      %s76 = sphi 0, %s60
      %s84 = sphi 0, %s86
      %s87 = sphi 0, %s84
      %s88 = sphi 0, %s87
      %s104 = sphi 0, %s88
    $region4: #{tpu_custom_call.1} parent=1 // loop_header_branch
      %11 = sbr.rel (%p9) target = $region8
    $region5: #{tpu_custom_call.1} parent=1 // loop_body
      %s13 = ssub.s32 %s8, 1
      %s14 = ssub.s32 %s8, 2
      %s21 = sadd.s32 1, %s16
      %p22 = scmp.ge.s32.totalorder %s21, 1
      %s23 = scalar_select %p22, 0, %s21
      %s24 = sadd.s32 1, %s15
      %s25 = scalar_select %p22, %s24, %s15
      %p26 = scmp.ge.s32.totalorder %s25, 2
      %s27 = scalar_select %p26, 0, %s25
      %s28 = ssub.s32 %s15, %s27
      %p29 = scmp.eq.s32.totalorder %s28, 0
      %s31 = sadd.s32 %s30, 1
      %s32 = scalar_select %p29, %s30, %s31
      %p35 = pneg %p29
      %p36 = scmp.eq.s32.totalorder %s8, 1
      %p37 = por %p35, %p36
      %p38 = scmp.ne.s32.totalorder %s30, %s33
      %p39 = scmp.eq.s32.totalorder %s8, 0
      %p40 = por %p38, %p39
      %p41 = scmp.ne.s32.totalorder %s30, %s33
      %p42 = scmp.eq.s32.totalorder %s13, 1
      %p43 = por %p41, %p42
      %p44 = scmp.ne.s32.totalorder %s33, %s34
      %p45 = scmp.eq.s32.totalorder %s13, 0
      %p46 = por %p44, %p45
      %p47 = scmp.ne.s32.totalorder %s33, %s34
      %p48 = scmp.eq.s32.totalorder %s14, 1
      %p49 = por %p47, %p48
      %p51 = scmp.ne.s32.totalorder %s34, %s50
      %p52 = scmp.eq.s32.totalorder %s14, 0
      %p53 = por %p51, %p52
      %s54 = ssub.s32 %s16, %s23
      %p55 = scmp.eq.s32.totalorder %s54, 0
      %s57 = sadd.s32 %s56, 1
      %s58 = scalar_select %p55, %s56, %s57
      %p61 = pneg %p55
      %p62 = scmp.eq.s32.totalorder %s8, 1
      %p63 = por %p61, %p62
      %p64 = scmp.ne.s32.totalorder %s56, %s59
      %p65 = scmp.eq.s32.totalorder %s8, 0
      %p66 = por %p64, %p65
      %p67 = scmp.ne.s32.totalorder %s56, %s59
      %p68 = scmp.eq.s32.totalorder %s13, 1
      %p69 = por %p67, %p68
      %p70 = scmp.ne.s32.totalorder %s59, %s60
      %p71 = scmp.eq.s32.totalorder %s13, 0
      %p72 = por %p70, %p71
      %p73 = scmp.ne.s32.totalorder %s59, %s60
      %p74 = scmp.eq.s32.totalorder %s14, 1
      %p75 = por %p73, %p74
      %p77 = scmp.ne.s32.totalorder %s60, %s76
      %p78 = scmp.eq.s32.totalorder %s14, 0
      %p79 = por %p77, %p78
      %s80 = ssub.s32 %s15, %s27
      %s81 = ssub.s32 %s16, %s23
      %s82 = sor.u32 %s80, %s81
      %p83 = scmp.eq.s32.totalorder %s82, 0
      %s85 = sadd.s32 %s84, 1
      %s86 = scalar_select %p83, %s84, %s85
      %p89 = pneg %p83
      %p90 = scmp.eq.s32.totalorder %s8, 1
      %p91 = por %p89, %p90
      %p92 = scmp.ne.s32.totalorder %s84, %s87
      %p93 = scmp.eq.s32.totalorder %s8, 0
      %p94 = por %p92, %p93
      %p95 = scmp.ne.s32.totalorder %s84, %s87
      %p96 = scmp.eq.s32.totalorder %s13, 1
      %p97 = por %p95, %p96
      %p98 = scmp.ne.s32.totalorder %s87, %s88
      %p99 = scmp.eq.s32.totalorder %s13, 0
      %p100 = por %p98, %p99
      %p101 = scmp.ne.s32.totalorder %s87, %s88
      %p102 = scmp.eq.s32.totalorder %s14, 1
      %p103 = por %p101, %p102
      %p105 = scmp.ne.s32.totalorder %s88, %s104
      %p106 = scmp.eq.s32.totalorder %s14, 0
      %p107 = por %p105, %p106
      %p108 = scmp.le.s32.totalorder 1, %s8
      %p109 = scmp.lt.s32.totalorder %s8, 3
      %p110 = pnand %p108, %p109
      %p111 = pneg %p110
      // Predicated region
      $region9: #{tpu_custom_call.1} parent=5 // pred_check
        _
      $region10: #{tpu_custom_call.1} parent=5 // pred_check_branch
        %113 = sbr.rel (%p110) target = $region12
      $region11: #{tpu_custom_call.1} parent=5 // pred_region
        %s114 = ssub.s32 %s8, 1
        // Predicated region
        $region13: #{tpu_custom_call.1} parent=11 // pred_check
          %p115 = pneg %p72
        $region14: #{tpu_custom_call.1} parent=11 // pred_check_branch
          %117 = sbr.rel (%p115) target = $region16
        $region15: #{tpu_custom_call.1} parent=11 // pred_region
          %p118 = scmp.lt.s32.totalorder %s18, 0
          %s119 = scalar_select %p118, %s18, 0
          %s120 = scalar_lea.vmem %s1, %s119
        $region16: #{tpu_custom_call.1} parent=11 // pred_fallthru
          _
      $region12: #{tpu_custom_call.1} parent=5 // pred_fallthru
        _
      %p121 = scmp.lt.s32.totalorder %s8, 2
      // Predicated region
      $region17: #{tpu_custom_call.1} parent=5 // pred_check
        %p122 = pneg %p121
      $region18: #{tpu_custom_call.1} parent=5 // pred_check_branch
        %124 = sbr.rel (%p122) target = $region20
      $region19: #{tpu_custom_call.1} parent=5 // pred_region
        // Predicated region
        $region21: #{tpu_custom_call.1} parent=19 // pred_check
          %p125 = pneg %p40
        $region22: #{tpu_custom_call.1} parent=19 // pred_check_branch
          %127 = sbr.rel (%p125) target = $region24
        $region23: #{tpu_custom_call.1} parent=19 // pred_region
          %s128 = sand.u32 %s30, 1
          %s129 = sand.u32 %s30, 1
          %s130 = smul.addr %s129, 512
          %s131 = scalar_lea.vmem [#allocation2], %s130
          %s132 = smul.addr %s15, 8
          %s133 = scalar_lea.vmem %s0, %s132
          // Predicated region
          $region25: #{tpu_custom_call.1} parent=23 // pred_check
            _
          $region26: #{tpu_custom_call.1} parent=23 // pred_check_branch
            %135 = sbr.rel (0) target = $region28
          $region27: #{tpu_custom_call.1} parent=23 // pred_region
            // Predicated region
            $region29: #{tpu_custom_call.1} parent=27 // pred_check
              _
            $region30: #{tpu_custom_call.1} parent=27 // pred_check_branch
              %137 = sbr.rel (0) target = $region32
            $region31: #{tpu_custom_call.1} parent=27 // pred_region
              // Predicated region
              $region44: #{tpu_custom_call.1} parent=31 // pred_check
                _
              $region45: #{tpu_custom_call.1} parent=31 // pred_check_branch
                %279 = sbr.rel (0) target = $region47
              $region46: #{tpu_custom_call.1} parent=31 // pred_region
                loop: start=0, step=1, limit=1
                $region48: #{tpu_custom_call.1} parent=46 // loop_pre_header
                  _
                $region49: #{tpu_custom_call.1} parent=46 // loop_header
                  %s281 = sphi 0, %s285
                  %p282 = scmp.ge.s32.totalorder %s281, 1
                  %s286 = sphi %s133, %s133
                  %s287 = sphi %s131, %s131
                $region50: #{tpu_custom_call.1} parent=46 // loop_header_branch
                  %284 = sbr.rel (%p282) target = $region54
                $region51: #{tpu_custom_call.1} parent=46 // loop_body
                  %v288 = vld [vmem:[%s286] sm:$0xff]
                  %289 = vst [vmem:[%s287] sm:$0xff] %v288
                  %v290 = vld [vmem:[%s286 + $0x10] sm:$0xff]
                  %291 = vst [vmem:[%s287 + $0x8] sm:$0xff] %v290
                  %v292 = vld [vmem:[%s286 + $0x20] sm:$0xff]
                  %293 = vst [vmem:[%s287 + $0x10] sm:$0xff] %v292
                  %v294 = vld [vmem:[%s286 + $0x30] sm:$0xff]
                  %295 = vst [vmem:[%s287 + $0x18] sm:$0xff] %v294
                  %v296 = vld [vmem:[%s286 + $0x40] sm:$0xff]
                  %297 = vst [vmem:[%s287 + $0x20] sm:$0xff] %v296
                  %v298 = vld [vmem:[%s286 + $0x50] sm:$0xff]
                  %299 = vst [vmem:[%s287 + $0x28] sm:$0xff] %v298
                  %v300 = vld [vmem:[%s286 + $0x60] sm:$0xff]
                  %301 = vst [vmem:[%s287 + $0x30] sm:$0xff] %v300
                  %v302 = vld [vmem:[%s286 + $0x70] sm:$0xff]
                  %303 = vst [vmem:[%s287 + $0x38] sm:$0xff] %v302
                  %v304 = vld [vmem:[%s286 + $0x80] sm:$0xff]
                  %305 = vst [vmem:[%s287 + $0x40] sm:$0xff] %v304
                  %v306 = vld [vmem:[%s286 + $0x90] sm:$0xff]
                  %307 = vst [vmem:[%s287 + $0x48] sm:$0xff] %v306
                  %v308 = vld [vmem:[%s286 + $0xa0] sm:$0xff]
                  %309 = vst [vmem:[%s287 + $0x50] sm:$0xff] %v308
                  %v310 = vld [vmem:[%s286 + $0xb0] sm:$0xff]
                  %311 = vst [vmem:[%s287 + $0x58] sm:$0xff] %v310
                  %v312 = vld [vmem:[%s286 + $0xc0] sm:$0xff]
                  %313 = vst [vmem:[%s287 + $0x60] sm:$0xff] %v312
                  %v314 = vld [vmem:[%s286 + $0xd0] sm:$0xff]
                  %315 = vst [vmem:[%s287 + $0x68] sm:$0xff] %v314
                  %v316 = vld [vmem:[%s286 + $0xe0] sm:$0xff]
                  %317 = vst [vmem:[%s287 + $0x70] sm:$0xff] %v316
                  %v318 = vld [vmem:[%s286 + $0xf0] sm:$0xff]
                  %319 = vst [vmem:[%s287 + $0x78] sm:$0xff] %v318
                  %v320 = vld [vmem:[%s286 + $0x100] sm:$0xff]
                  %321 = vst [vmem:[%s287 + $0x80] sm:$0xff] %v320
                  %v322 = vld [vmem:[%s286 + $0x110] sm:$0xff]
                  %323 = vst [vmem:[%s287 + $0x88] sm:$0xff] %v322
                  %v324 = vld [vmem:[%s286 + $0x120] sm:$0xff]
                  %325 = vst [vmem:[%s287 + $0x90] sm:$0xff] %v324
                  %v326 = vld [vmem:[%s286 + $0x130] sm:$0xff]
                  %327 = vst [vmem:[%s287 + $0x98] sm:$0xff] %v326
                  %v328 = vld [vmem:[%s286 + $0x140] sm:$0xff]
                  %329 = vst [vmem:[%s287 + $0xa0] sm:$0xff] %v328
                  %v330 = vld [vmem:[%s286 + $0x150] sm:$0xff]
                  %331 = vst [vmem:[%s287 + $0xa8] sm:$0xff] %v330
                  %v332 = vld [vmem:[%s286 + $0x160] sm:$0xff]
                  %333 = vst [vmem:[%s287 + $0xb0] sm:$0xff] %v332
                  %v334 = vld [vmem:[%s286 + $0x170] sm:$0xff]
                  %335 = vst [vmem:[%s287 + $0xb8] sm:$0xff] %v334
                  %v336 = vld [vmem:[%s286 + $0x180] sm:$0xff]
                  %337 = vst [vmem:[%s287 + $0xc0] sm:$0xff] %v336
                  %v338 = vld [vmem:[%s286 + $0x190] sm:$0xff]
                  %339 = vst [vmem:[%s287 + $0xc8] sm:$0xff] %v338
                  %v340 = vld [vmem:[%s286 + $0x1a0] sm:$0xff]
                  %341 = vst [vmem:[%s287 + $0xd0] sm:$0xff] %v340
                  %v342 = vld [vmem:[%s286 + $0x1b0] sm:$0xff]
                  %343 = vst [vmem:[%s287 + $0xd8] sm:$0xff] %v342
                  %v344 = vld [vmem:[%s286 + $0x1c0] sm:$0xff]
                  %345 = vst [vmem:[%s287 + $0xe0] sm:$0xff] %v344
                  %v346 = vld [vmem:[%s286 + $0x1d0] sm:$0xff]
                  %347 = vst [vmem:[%s287 + $0xe8] sm:$0xff] %v346
                  %v348 = vld [vmem:[%s286 + $0x1e0] sm:$0xff]
                  %349 = vst [vmem:[%s287 + $0xf0] sm:$0xff] %v348
                  %v350 = vld [vmem:[%s286 + $0x1f0] sm:$0xff]
                  %351 = vst [vmem:[%s287 + $0xf8] sm:$0xff] %v350
                  %v352 = vld [vmem:[%s286 + $0x200] sm:$0xff]
                  %353 = vst [vmem:[%s287 + $0x100] sm:$0xff] %v352
                  %v354 = vld [vmem:[%s286 + $0x210] sm:$0xff]
                  %355 = vst [vmem:[%s287 + $0x108] sm:$0xff] %v354
                  %v356 = vld [vmem:[%s286 + $0x220] sm:$0xff]
                  %357 = vst [vmem:[%s287 + $0x110] sm:$0xff] %v356
                  %v358 = vld [vmem:[%s286 + $0x230] sm:$0xff]
                  %359 = vst [vmem:[%s287 + $0x118] sm:$0xff] %v358
                  %v360 = vld [vmem:[%s286 + $0x240] sm:$0xff]
                  %361 = vst [vmem:[%s287 + $0x120] sm:$0xff] %v360
                  %v362 = vld [vmem:[%s286 + $0x250] sm:$0xff]
                  %363 = vst [vmem:[%s287 + $0x128] sm:$0xff] %v362
                  %v364 = vld [vmem:[%s286 + $0x260] sm:$0xff]
                  %365 = vst [vmem:[%s287 + $0x130] sm:$0xff] %v364
                  %v366 = vld [vmem:[%s286 + $0x270] sm:$0xff]
                  %367 = vst [vmem:[%s287 + $0x138] sm:$0xff] %v366
                  %v368 = vld [vmem:[%s286 + $0x280] sm:$0xff]
                  %369 = vst [vmem:[%s287 + $0x140] sm:$0xff] %v368
                  %v370 = vld [vmem:[%s286 + $0x290] sm:$0xff]
                  %371 = vst [vmem:[%s287 + $0x148] sm:$0xff] %v370
                  %v372 = vld [vmem:[%s286 + $0x2a0] sm:$0xff]
                  %373 = vst [vmem:[%s287 + $0x150] sm:$0xff] %v372
                  %v374 = vld [vmem:[%s286 + $0x2b0] sm:$0xff]
                  %375 = vst [vmem:[%s287 + $0x158] sm:$0xff] %v374
                  %v376 = vld [vmem:[%s286 + $0x2c0] sm:$0xff]
                  %377 = vst [vmem:[%s287 + $0x160] sm:$0xff] %v376
                  %v378 = vld [vmem:[%s286 + $0x2d0] sm:$0xff]
                  %379 = vst [vmem:[%s287 + $0x168] sm:$0xff] %v378
                  %v380 = vld [vmem:[%s286 + $0x2e0] sm:$0xff]
                  %381 = vst [vmem:[%s287 + $0x170] sm:$0xff] %v380
                  %v382 = vld [vmem:[%s286 + $0x2f0] sm:$0xff]
                  %383 = vst [vmem:[%s287 + $0x178] sm:$0xff] %v382
                  %v384 = vld [vmem:[%s286 + $0x300] sm:$0xff]
                  %385 = vst [vmem:[%s287 + $0x180] sm:$0xff] %v384
                  %v386 = vld [vmem:[%s286 + $0x310] sm:$0xff]
                  %387 = vst [vmem:[%s287 + $0x188] sm:$0xff] %v386
                  %v388 = vld [vmem:[%s286 + $0x320] sm:$0xff]
                  %389 = vst [vmem:[%s287 + $0x190] sm:$0xff] %v388
                  %v390 = vld [vmem:[%s286 + $0x330] sm:$0xff]
                  %391 = vst [vmem:[%s287 + $0x198] sm:$0xff] %v390
                  %v392 = vld [vmem:[%s286 + $0x340] sm:$0xff]
                  %393 = vst [vmem:[%s287 + $0x1a0] sm:$0xff] %v392
                  %v394 = vld [vmem:[%s286 + $0x350] sm:$0xff]
                  %395 = vst [vmem:[%s287 + $0x1a8] sm:$0xff] %v394
                  %v396 = vld [vmem:[%s286 + $0x360] sm:$0xff]
                  %397 = vst [vmem:[%s287 + $0x1b0] sm:$0xff] %v396
                  %v398 = vld [vmem:[%s286 + $0x370] sm:$0xff]
                  %399 = vst [vmem:[%s287 + $0x1b8] sm:$0xff] %v398
                  %v400 = vld [vmem:[%s286 + $0x380] sm:$0xff]
                  %401 = vst [vmem:[%s287 + $0x1c0] sm:$0xff] %v400
                  %v402 = vld [vmem:[%s286 + $0x390] sm:$0xff]
                  %403 = vst [vmem:[%s287 + $0x1c8] sm:$0xff] %v402
                  %v404 = vld [vmem:[%s286 + $0x3a0] sm:$0xff]
                  %405 = vst [vmem:[%s287 + $0x1d0] sm:$0xff] %v404
                  %v406 = vld [vmem:[%s286 + $0x3b0] sm:$0xff]
                  %407 = vst [vmem:[%s287 + $0x1d8] sm:$0xff] %v406
                  %v408 = vld [vmem:[%s286 + $0x3c0] sm:$0xff]
                  %409 = vst [vmem:[%s287 + $0x1e0] sm:$0xff] %v408
                  %v410 = vld [vmem:[%s286 + $0x3d0] sm:$0xff]
                  %411 = vst [vmem:[%s287 + $0x1e8] sm:$0xff] %v410
                  %v412 = vld [vmem:[%s286 + $0x3e0] sm:$0xff]
                  %413 = vst [vmem:[%s287 + $0x1f0] sm:$0xff] %v412
                  %v414 = vld [vmem:[%s286 + $0x3f0] sm:$0xff]
                  %415 = vst [vmem:[%s287 + $0x1f8] sm:$0xff] %v414
                $region52: #{tpu_custom_call.1} parent=46 // loop_footer
                  %s285 = sadd.s32 1, %s281
                $region53: #{tpu_custom_call.1} parent=46 // loop_footer_branch
                  %280 = sbr.rel target = $region49
                $region54: #{tpu_custom_call.1} parent=46 // loop_exit
                  _
              $region47: #{tpu_custom_call.1} parent=31 // pred_fallthru
                _
              // Predicated region
              $region55: #{tpu_custom_call.1} parent=31 // pred_check
                _
              $region56: #{tpu_custom_call.1} parent=31 // pred_check_branch
                %417 = sbr.rel target = $region58
              $region57: #{tpu_custom_call.1} parent=31 // pred_region
                _
              $region58: #{tpu_custom_call.1} parent=31 // pred_fallthru
                _
            $region32: #{tpu_custom_call.1} parent=27 // pred_fallthru
              _
            // Predicated region
            $region33: #{tpu_custom_call.1} parent=27 // pred_check
              _
            $region34: #{tpu_custom_call.1} parent=27 // pred_check_branch
              %139 = sbr.rel target = $region36
            $region35: #{tpu_custom_call.1} parent=27 // pred_region
              %s141 = ssub.s32 256, 1
              loop: start=0, step=1, limit=1
              $region37: #{tpu_custom_call.1} parent=35 // loop_pre_header
                _
              $region38: #{tpu_custom_call.1} parent=35 // loop_header
                %s143 = sphi 0, %s147
                %p144 = scmp.ge.s32.totalorder %s143, 1
                %s148 = sphi %s133, %s133
                %s149 = sphi %s131, %s131
              $region39: #{tpu_custom_call.1} parent=35 // loop_header_branch
                %146 = sbr.rel (%p144) target = $region43
              $region40: #{tpu_custom_call.1} parent=35 // loop_body
                %v150 = vld [vmem:[%s148] sm:%s141]
                %151 = vst [vmem:[%s149] sm:%s141] %v150
                %v152 = vld [vmem:[%s148 + $0x10] sm:%s141]
                %153 = vst [vmem:[%s149 + $0x8] sm:%s141] %v152
                %v154 = vld [vmem:[%s148 + $0x20] sm:%s141]
                %155 = vst [vmem:[%s149 + $0x10] sm:%s141] %v154
                %v156 = vld [vmem:[%s148 + $0x30] sm:%s141]
                %157 = vst [vmem:[%s149 + $0x18] sm:%s141] %v156
                %v158 = vld [vmem:[%s148 + $0x40] sm:%s141]
                %159 = vst [vmem:[%s149 + $0x20] sm:%s141] %v158
                %v160 = vld [vmem:[%s148 + $0x50] sm:%s141]
                %161 = vst [vmem:[%s149 + $0x28] sm:%s141] %v160
                %v162 = vld [vmem:[%s148 + $0x60] sm:%s141]
                %163 = vst [vmem:[%s149 + $0x30] sm:%s141] %v162
                %v164 = vld [vmem:[%s148 + $0x70] sm:%s141]
                %165 = vst [vmem:[%s149 + $0x38] sm:%s141] %v164
                %v166 = vld [vmem:[%s148 + $0x80] sm:%s141]
                %167 = vst [vmem:[%s149 + $0x40] sm:%s141] %v166
                %v168 = vld [vmem:[%s148 + $0x90] sm:%s141]
                %169 = vst [vmem:[%s149 + $0x48] sm:%s141] %v168
                %v170 = vld [vmem:[%s148 + $0xa0] sm:%s141]
                %171 = vst [vmem:[%s149 + $0x50] sm:%s141] %v170
                %v172 = vld [vmem:[%s148 + $0xb0] sm:%s141]
                %173 = vst [vmem:[%s149 + $0x58] sm:%s141] %v172
                %v174 = vld [vmem:[%s148 + $0xc0] sm:%s141]
                %175 = vst [vmem:[%s149 + $0x60] sm:%s141] %v174
                %v176 = vld [vmem:[%s148 + $0xd0] sm:%s141]
                %177 = vst [vmem:[%s149 + $0x68] sm:%s141] %v176
                %v178 = vld [vmem:[%s148 + $0xe0] sm:%s141]
                %179 = vst [vmem:[%s149 + $0x70] sm:%s141] %v178
                %v180 = vld [vmem:[%s148 + $0xf0] sm:%s141]
                %181 = vst [vmem:[%s149 + $0x78] sm:%s141] %v180
                %v182 = vld [vmem:[%s148 + $0x100] sm:%s141]
                %183 = vst [vmem:[%s149 + $0x80] sm:%s141] %v182
                %v184 = vld [vmem:[%s148 + $0x110] sm:%s141]
                %185 = vst [vmem:[%s149 + $0x88] sm:%s141] %v184
                %v186 = vld [vmem:[%s148 + $0x120] sm:%s141]
                %187 = vst [vmem:[%s149 + $0x90] sm:%s141] %v186
                %v188 = vld [vmem:[%s148 + $0x130] sm:%s141]
                %189 = vst [vmem:[%s149 + $0x98] sm:%s141] %v188
                %v190 = vld [vmem:[%s148 + $0x140] sm:%s141]
                %191 = vst [vmem:[%s149 + $0xa0] sm:%s141] %v190
                %v192 = vld [vmem:[%s148 + $0x150] sm:%s141]
                %193 = vst [vmem:[%s149 + $0xa8] sm:%s141] %v192
                %v194 = vld [vmem:[%s148 + $0x160] sm:%s141]
                %195 = vst [vmem:[%s149 + $0xb0] sm:%s141] %v194
                %v196 = vld [vmem:[%s148 + $0x170] sm:%s141]
                %197 = vst [vmem:[%s149 + $0xb8] sm:%s141] %v196
                %v198 = vld [vmem:[%s148 + $0x180] sm:%s141]
                %199 = vst [vmem:[%s149 + $0xc0] sm:%s141] %v198
                %v200 = vld [vmem:[%s148 + $0x190] sm:%s141]
                %201 = vst [vmem:[%s149 + $0xc8] sm:%s141] %v200
                %v202 = vld [vmem:[%s148 + $0x1a0] sm:%s141]
                %203 = vst [vmem:[%s149 + $0xd0] sm:%s141] %v202
                %v204 = vld [vmem:[%s148 + $0x1b0] sm:%s141]
                %205 = vst [vmem:[%s149 + $0xd8] sm:%s141] %v204
                %v206 = vld [vmem:[%s148 + $0x1c0] sm:%s141]
                %207 = vst [vmem:[%s149 + $0xe0] sm:%s141] %v206
                %v208 = vld [vmem:[%s148 + $0x1d0] sm:%s141]
                %209 = vst [vmem:[%s149 + $0xe8] sm:%s141] %v208
                %v210 = vld [vmem:[%s148 + $0x1e0] sm:%s141]
                %211 = vst [vmem:[%s149 + $0xf0] sm:%s141] %v210
                %v212 = vld [vmem:[%s148 + $0x1f0] sm:%s141]
                %213 = vst [vmem:[%s149 + $0xf8] sm:%s141] %v212
                %v214 = vld [vmem:[%s148 + $0x200] sm:%s141]
                %215 = vst [vmem:[%s149 + $0x100] sm:%s141] %v214
                %v216 = vld [vmem:[%s148 + $0x210] sm:%s141]
                %217 = vst [vmem:[%s149 + $0x108] sm:%s141] %v216
                %v218 = vld [vmem:[%s148 + $0x220] sm:%s141]
                %219 = vst [vmem:[%s149 + $0x110] sm:%s141] %v218
                %v220 = vld [vmem:[%s148 + $0x230] sm:%s141]
                %221 = vst [vmem:[%s149 + $0x118] sm:%s141] %v220
                %v222 = vld [vmem:[%s148 + $0x240] sm:%s141]
                %223 = vst [vmem:[%s149 + $0x120] sm:%s141] %v222
                %v224 = vld [vmem:[%s148 + $0x250] sm:%s141]
                %225 = vst [vmem:[%s149 + $0x128] sm:%s141] %v224
                %v226 = vld [vmem:[%s148 + $0x260] sm:%s141]
                %227 = vst [vmem:[%s149 + $0x130] sm:%s141] %v226
                %v228 = vld [vmem:[%s148 + $0x270] sm:%s141]
                %229 = vst [vmem:[%s149 + $0x138] sm:%s141] %v228
                %v230 = vld [vmem:[%s148 + $0x280] sm:%s141]
                %231 = vst [vmem:[%s149 + $0x140] sm:%s141] %v230
                %v232 = vld [vmem:[%s148 + $0x290] sm:%s141]
                %233 = vst [vmem:[%s149 + $0x148] sm:%s141] %v232
                %v234 = vld [vmem:[%s148 + $0x2a0] sm:%s141]
                %235 = vst [vmem:[%s149 + $0x150] sm:%s141] %v234
                %v236 = vld [vmem:[%s148 + $0x2b0] sm:%s141]
                %237 = vst [vmem:[%s149 + $0x158] sm:%s141] %v236
                %v238 = vld [vmem:[%s148 + $0x2c0] sm:%s141]
                %239 = vst [vmem:[%s149 + $0x160] sm:%s141] %v238
                %v240 = vld [vmem:[%s148 + $0x2d0] sm:%s141]
                %241 = vst [vmem:[%s149 + $0x168] sm:%s141] %v240
                %v242 = vld [vmem:[%s148 + $0x2e0] sm:%s141]
                %243 = vst [vmem:[%s149 + $0x170] sm:%s141] %v242
                %v244 = vld [vmem:[%s148 + $0x2f0] sm:%s141]
                %245 = vst [vmem:[%s149 + $0x178] sm:%s141] %v244
                %v246 = vld [vmem:[%s148 + $0x300] sm:%s141]
                %247 = vst [vmem:[%s149 + $0x180] sm:%s141] %v246
                %v248 = vld [vmem:[%s148 + $0x310] sm:%s141]
                %249 = vst [vmem:[%s149 + $0x188] sm:%s141] %v248
                %v250 = vld [vmem:[%s148 + $0x320] sm:%s141]
                %251 = vst [vmem:[%s149 + $0x190] sm:%s141] %v250
                %v252 = vld [vmem:[%s148 + $0x330] sm:%s141]
                %253 = vst [vmem:[%s149 + $0x198] sm:%s141] %v252
                %v254 = vld [vmem:[%s148 + $0x340] sm:%s141]
                %255 = vst [vmem:[%s149 + $0x1a0] sm:%s141] %v254
                %v256 = vld [vmem:[%s148 + $0x350] sm:%s141]
                %257 = vst [vmem:[%s149 + $0x1a8] sm:%s141] %v256
                %v258 = vld [vmem:[%s148 + $0x360] sm:%s141]
                %259 = vst [vmem:[%s149 + $0x1b0] sm:%s141] %v258
                %v260 = vld [vmem:[%s148 + $0x370] sm:%s141]
                %261 = vst [vmem:[%s149 + $0x1b8] sm:%s141] %v260
                %v262 = vld [vmem:[%s148 + $0x380] sm:%s141]
                %263 = vst [vmem:[%s149 + $0x1c0] sm:%s141] %v262
                %v264 = vld [vmem:[%s148 + $0x390] sm:%s141]
                %265 = vst [vmem:[%s149 + $0x1c8] sm:%s141] %v264
                %v266 = vld [vmem:[%s148 + $0x3a0] sm:%s141]
                %267 = vst [vmem:[%s149 + $0x1d0] sm:%s141] %v266
                %v268 = vld [vmem:[%s148 + $0x3b0] sm:%s141]
                %269 = vst [vmem:[%s149 + $0x1d8] sm:%s141] %v268
                %v270 = vld [vmem:[%s148 + $0x3c0] sm:%s141]
                %271 = vst [vmem:[%s149 + $0x1e0] sm:%s141] %v270
                %v272 = vld [vmem:[%s148 + $0x3d0] sm:%s141]
                %273 = vst [vmem:[%s149 + $0x1e8] sm:%s141] %v272
                %v274 = vld [vmem:[%s148 + $0x3e0] sm:%s141]
                %275 = vst [vmem:[%s149 + $0x1f0] sm:%s141] %v274
                %v276 = vld [vmem:[%s148 + $0x3f0] sm:%s141]
                %277 = vst [vmem:[%s149 + $0x1f8] sm:%s141] %v276
              $region41: #{tpu_custom_call.1} parent=35 // loop_footer
                %s147 = sadd.s32 1, %s143
              $region42: #{tpu_custom_call.1} parent=35 // loop_footer_branch
                %142 = sbr.rel target = $region38
              $region43: #{tpu_custom_call.1} parent=35 // loop_exit
                _
            $region36: #{tpu_custom_call.1} parent=27 // pred_fallthru
              _
          $region28: #{tpu_custom_call.1} parent=23 // pred_fallthru
            _
          %418 = vnop
        $region24: #{tpu_custom_call.1} parent=19 // pred_fallthru
          _
      $region20: #{tpu_custom_call.1} parent=5 // pred_fallthru
        _
      %p419 = scmp.le.s32.totalorder 1, %s8
      %p420 = scmp.lt.s32.totalorder %s8, 3
      %p421 = pnand %p419, %p420
      %p422 = pneg %p421
      // Predicated region
      $region59: #{tpu_custom_call.1} parent=5 // pred_check
        _
      $region60: #{tpu_custom_call.1} parent=5 // pred_check_branch
        %424 = sbr.rel (%p421) target = $region62
      $region61: #{tpu_custom_call.1} parent=5 // pred_region
        %s425 = ssub.s32 %s8, 1
        %s426 = sand.u32 %s33, 1
        %s427 = sand.u32 %s33, 1
        %s428 = smul.addr %s427, 512
        %s429 = scalar_lea.vmem [#allocation2], %s428
        // Predicated region
        $region63: #{tpu_custom_call.1} parent=61 // pred_check
          %p430 = pneg %p46
        $region64: #{tpu_custom_call.1} parent=61 // pred_check_branch
          %432 = sbr.rel (%p430) target = $region66
        $region65: #{tpu_custom_call.1} parent=61 // pred_region
          _
        $region66: #{tpu_custom_call.1} parent=61 // pred_fallthru
          _
        %s433 = sand.u32 %s33, 1
        %s434 = sand.u32 %s33, 1
        %s435 = smul.addr %s434, 512
        %s436 = scalar_lea.vmem [#allocation2], %s435
        %p437 = pneg %p46
        %p438 = pneg %p43
        %p439 = scmp.lt.s32.totalorder %s18, 0
        %s440 = scalar_select %p439, %s18, 0
        %s441 = scalar_lea.vmem %s1, %s440
        %p442 = pneg %p72
        %p443 = pneg %p69
        %p444 = pneg %p100
        %p445 = pneg %p97
        %s446 = sand.u32 %s87, 1
        %s447 = sand.u32 %s87, 1
        %s448 = smul.addr %s447, 1024
        %s449 = scalar_lea.vmem [#allocation3], %s448
        %p450 = scmp.lt.s32.totalorder %s18, 0
        %s451 = scalar_select %p450, %s18, 0
        %s452 = scalar_lea.vmem %s1, %s451
        %v453 = vld [vmem:[%s429] sm:$0xff]
        %v454 = vld [vmem:[%s429 + $0x8] sm:$0xff]
        %v455 = vld [vmem:[%s429 + $0x10] sm:$0xff]
        %v456 = vld [vmem:[%s429 + $0x18] sm:$0xff]
        %v457 = vld [vmem:[%s429 + $0x20] sm:$0xff]
        %v458 = vld [vmem:[%s429 + $0x28] sm:$0xff]
        %v459 = vld [vmem:[%s429 + $0x30] sm:$0xff]
        %v460 = vld [vmem:[%s429 + $0x38] sm:$0xff]
        %v461 = vld [vmem:[%s429 + $0x40] sm:$0xff]
        %v462 = vld [vmem:[%s429 + $0x48] sm:$0xff]
        %v463 = vld [vmem:[%s429 + $0x50] sm:$0xff]
        %v464 = vld [vmem:[%s429 + $0x58] sm:$0xff]
        %v465 = vld [vmem:[%s429 + $0x60] sm:$0xff]
        %v466 = vld [vmem:[%s429 + $0x68] sm:$0xff]
        %v467 = vld [vmem:[%s429 + $0x70] sm:$0xff]
        %v468 = vld [vmem:[%s429 + $0x78] sm:$0xff]
        %v469 = vld [vmem:[%s429 + $0x80] sm:$0xff]
        %v470 = vld [vmem:[%s429 + $0x88] sm:$0xff]
        %v471 = vld [vmem:[%s429 + $0x90] sm:$0xff]
        %v472 = vld [vmem:[%s429 + $0x98] sm:$0xff]
        %v473 = vld [vmem:[%s429 + $0xa0] sm:$0xff]
        %v474 = vld [vmem:[%s429 + $0xa8] sm:$0xff]
        %v475 = vld [vmem:[%s429 + $0xb0] sm:$0xff]
        %v476 = vld [vmem:[%s429 + $0xb8] sm:$0xff]
        %v477 = vld [vmem:[%s429 + $0xc0] sm:$0xff]
        %v478 = vld [vmem:[%s429 + $0xc8] sm:$0xff]
        %v479 = vld [vmem:[%s429 + $0xd0] sm:$0xff]
        %v480 = vld [vmem:[%s429 + $0xd8] sm:$0xff]
        %v481 = vld [vmem:[%s429 + $0xe0] sm:$0xff]
        %v482 = vld [vmem:[%s429 + $0xe8] sm:$0xff]
        %v483 = vld [vmem:[%s429 + $0xf0] sm:$0xff]
        %v484 = vld [vmem:[%s429 + $0xf8] sm:$0xff]
        %v485 = vld [vmem:[%s429 + $0x100] sm:$0xff]
        %v486 = vld [vmem:[%s429 + $0x108] sm:$0xff]
        %v487 = vld [vmem:[%s429 + $0x110] sm:$0xff]
        %v488 = vld [vmem:[%s429 + $0x118] sm:$0xff]
        %v489 = vld [vmem:[%s429 + $0x120] sm:$0xff]
        %v490 = vld [vmem:[%s429 + $0x128] sm:$0xff]
        %v491 = vld [vmem:[%s429 + $0x130] sm:$0xff]
        %v492 = vld [vmem:[%s429 + $0x138] sm:$0xff]
        %v493 = vld [vmem:[%s429 + $0x140] sm:$0xff]
        %v494 = vld [vmem:[%s429 + $0x148] sm:$0xff]
        %v495 = vld [vmem:[%s429 + $0x150] sm:$0xff]
        %v496 = vld [vmem:[%s429 + $0x158] sm:$0xff]
        %v497 = vld [vmem:[%s429 + $0x160] sm:$0xff]
        %v498 = vld [vmem:[%s429 + $0x168] sm:$0xff]
        %v499 = vld [vmem:[%s429 + $0x170] sm:$0xff]
        %v500 = vld [vmem:[%s429 + $0x178] sm:$0xff]
        %v501 = vld [vmem:[%s429 + $0x180] sm:$0xff]
        %v502 = vld [vmem:[%s429 + $0x188] sm:$0xff]
        %v503 = vld [vmem:[%s429 + $0x190] sm:$0xff]
        %v504 = vld [vmem:[%s429 + $0x198] sm:$0xff]
        %v505 = vld [vmem:[%s429 + $0x1a0] sm:$0xff]
        %v506 = vld [vmem:[%s429 + $0x1a8] sm:$0xff]
        %v507 = vld [vmem:[%s429 + $0x1b0] sm:$0xff]
        %v508 = vld [vmem:[%s429 + $0x1b8] sm:$0xff]
        %v509 = vld [vmem:[%s429 + $0x1c0] sm:$0xff]
        %v510 = vld [vmem:[%s429 + $0x1c8] sm:$0xff]
        %v511 = vld [vmem:[%s429 + $0x1d0] sm:$0xff]
        %v512 = vld [vmem:[%s429 + $0x1d8] sm:$0xff]
        %v513 = vld [vmem:[%s429 + $0x1e0] sm:$0xff]
        %v514 = vld [vmem:[%s429 + $0x1e8] sm:$0xff]
        %v515 = vld [vmem:[%s429 + $0x1f0] sm:$0xff]
        %v516 = vld [vmem:[%s429 + $0x1f8] sm:$0xff]
        %518 = vset.pattern.permute.xlu0 0
        %519 = vperm.xlu0 %518, %v453
        %v520 = vpop.permute.xlu0 %519
        %523 = vset.pattern.permute.xlu0 0
        %524 = vperm.xlu0 %523, %v454
        %v525 = vpop.permute.xlu0 %524
        %528 = vset.pattern.permute.xlu0 0
        %529 = vperm.xlu0 %528, %v455
        %v530 = vpop.permute.xlu0 %529
        %533 = vset.pattern.permute.xlu0 0
        %534 = vperm.xlu0 %533, %v456
        %v535 = vpop.permute.xlu0 %534
        %538 = vset.pattern.permute.xlu0 0
        %539 = vperm.xlu0 %538, %v457
        %v540 = vpop.permute.xlu0 %539
        %543 = vset.pattern.permute.xlu0 0
        %544 = vperm.xlu0 %543, %v458
        %v545 = vpop.permute.xlu0 %544
        %548 = vset.pattern.permute.xlu0 0
        %549 = vperm.xlu0 %548, %v459
        %v550 = vpop.permute.xlu0 %549
        %553 = vset.pattern.permute.xlu0 0
        %554 = vperm.xlu0 %553, %v460
        %v555 = vpop.permute.xlu0 %554
        %558 = vset.pattern.permute.xlu0 0
        %559 = vperm.xlu0 %558, %v461
        %v560 = vpop.permute.xlu0 %559
        %563 = vset.pattern.permute.xlu0 0
        %564 = vperm.xlu0 %563, %v462
        %v565 = vpop.permute.xlu0 %564
        %568 = vset.pattern.permute.xlu0 0
        %569 = vperm.xlu0 %568, %v463
        %v570 = vpop.permute.xlu0 %569
        %573 = vset.pattern.permute.xlu0 0
        %574 = vperm.xlu0 %573, %v464
        %v575 = vpop.permute.xlu0 %574
        %578 = vset.pattern.permute.xlu0 0
        %579 = vperm.xlu0 %578, %v465
        %v580 = vpop.permute.xlu0 %579
        %583 = vset.pattern.permute.xlu0 0
        %584 = vperm.xlu0 %583, %v466
        %v585 = vpop.permute.xlu0 %584
        %588 = vset.pattern.permute.xlu0 0
        %589 = vperm.xlu0 %588, %v467
        %v590 = vpop.permute.xlu0 %589
        %593 = vset.pattern.permute.xlu0 0
        %594 = vperm.xlu0 %593, %v468
        %v595 = vpop.permute.xlu0 %594
        %598 = vset.pattern.permute.xlu0 0
        %599 = vperm.xlu0 %598, %v469
        %v600 = vpop.permute.xlu0 %599
        %603 = vset.pattern.permute.xlu0 0
        %604 = vperm.xlu0 %603, %v470
        %v605 = vpop.permute.xlu0 %604
        %608 = vset.pattern.permute.xlu0 0
        %609 = vperm.xlu0 %608, %v471
        %v610 = vpop.permute.xlu0 %609
        %613 = vset.pattern.permute.xlu0 0
        %614 = vperm.xlu0 %613, %v472
        %v615 = vpop.permute.xlu0 %614
        %618 = vset.pattern.permute.xlu0 0
        %619 = vperm.xlu0 %618, %v473
        %v620 = vpop.permute.xlu0 %619
        %623 = vset.pattern.permute.xlu0 0
        %624 = vperm.xlu0 %623, %v474
        %v625 = vpop.permute.xlu0 %624
        %628 = vset.pattern.permute.xlu0 0
        %629 = vperm.xlu0 %628, %v475
        %v630 = vpop.permute.xlu0 %629
        %633 = vset.pattern.permute.xlu0 0
        %634 = vperm.xlu0 %633, %v476
        %v635 = vpop.permute.xlu0 %634
        %638 = vset.pattern.permute.xlu0 0
        %639 = vperm.xlu0 %638, %v477
        %v640 = vpop.permute.xlu0 %639
        %643 = vset.pattern.permute.xlu0 0
        %644 = vperm.xlu0 %643, %v478
        %v645 = vpop.permute.xlu0 %644
        %648 = vset.pattern.permute.xlu0 0
        %649 = vperm.xlu0 %648, %v479
        %v650 = vpop.permute.xlu0 %649
        %653 = vset.pattern.permute.xlu0 0
        %654 = vperm.xlu0 %653, %v480
        %v655 = vpop.permute.xlu0 %654
        %658 = vset.pattern.permute.xlu0 0
        %659 = vperm.xlu0 %658, %v481
        %v660 = vpop.permute.xlu0 %659
        %663 = vset.pattern.permute.xlu0 0
        %664 = vperm.xlu0 %663, %v482
        %v665 = vpop.permute.xlu0 %664
        %668 = vset.pattern.permute.xlu0 0
        %669 = vperm.xlu0 %668, %v483
        %v670 = vpop.permute.xlu0 %669
        %673 = vset.pattern.permute.xlu0 0
        %674 = vperm.xlu0 %673, %v484
        %v675 = vpop.permute.xlu0 %674
        %678 = vset.pattern.permute.xlu0 0
        %679 = vperm.xlu0 %678, %v485
        %v680 = vpop.permute.xlu0 %679
        %683 = vset.pattern.permute.xlu0 0
        %684 = vperm.xlu0 %683, %v486
        %v685 = vpop.permute.xlu0 %684
        %688 = vset.pattern.permute.xlu0 0
        %689 = vperm.xlu0 %688, %v487
        %v690 = vpop.permute.xlu0 %689
        %693 = vset.pattern.permute.xlu0 0
        %694 = vperm.xlu0 %693, %v488
        %v695 = vpop.permute.xlu0 %694
        %698 = vset.pattern.permute.xlu0 0
        %699 = vperm.xlu0 %698, %v489
        %v700 = vpop.permute.xlu0 %699
        %703 = vset.pattern.permute.xlu0 0
        %704 = vperm.xlu0 %703, %v490
        %v705 = vpop.permute.xlu0 %704
        %708 = vset.pattern.permute.xlu0 0
        %709 = vperm.xlu0 %708, %v491
        %v710 = vpop.permute.xlu0 %709
        %713 = vset.pattern.permute.xlu0 0
        %714 = vperm.xlu0 %713, %v492
        %v715 = vpop.permute.xlu0 %714
        %718 = vset.pattern.permute.xlu0 0
        %719 = vperm.xlu0 %718, %v493
        %v720 = vpop.permute.xlu0 %719
        %723 = vset.pattern.permute.xlu0 0
        %724 = vperm.xlu0 %723, %v494
        %v725 = vpop.permute.xlu0 %724
        %728 = vset.pattern.permute.xlu0 0
        %729 = vperm.xlu0 %728, %v495
        %v730 = vpop.permute.xlu0 %729
        %733 = vset.pattern.permute.xlu0 0
        %734 = vperm.xlu0 %733, %v496
        %v735 = vpop.permute.xlu0 %734
        %738 = vset.pattern.permute.xlu0 0
        %739 = vperm.xlu0 %738, %v497
        %v740 = vpop.permute.xlu0 %739
        %743 = vset.pattern.permute.xlu0 0
        %744 = vperm.xlu0 %743, %v498
        %v745 = vpop.permute.xlu0 %744
        %748 = vset.pattern.permute.xlu0 0
        %749 = vperm.xlu0 %748, %v499
        %v750 = vpop.permute.xlu0 %749
        %753 = vset.pattern.permute.xlu0 0
        %754 = vperm.xlu0 %753, %v500
        %v755 = vpop.permute.xlu0 %754
        %758 = vset.pattern.permute.xlu0 0
        %759 = vperm.xlu0 %758, %v501
        %v760 = vpop.permute.xlu0 %759
        %763 = vset.pattern.permute.xlu0 0
        %764 = vperm.xlu0 %763, %v502
        %v765 = vpop.permute.xlu0 %764
        %768 = vset.pattern.permute.xlu0 0
        %769 = vperm.xlu0 %768, %v503
        %v770 = vpop.permute.xlu0 %769
        %773 = vset.pattern.permute.xlu0 0
        %774 = vperm.xlu0 %773, %v504
        %v775 = vpop.permute.xlu0 %774
        %778 = vset.pattern.permute.xlu0 0
        %779 = vperm.xlu0 %778, %v505
        %v780 = vpop.permute.xlu0 %779
        %783 = vset.pattern.permute.xlu0 0
        %784 = vperm.xlu0 %783, %v506
        %v785 = vpop.permute.xlu0 %784
        %788 = vset.pattern.permute.xlu0 0
        %789 = vperm.xlu0 %788, %v507
        %v790 = vpop.permute.xlu0 %789
        %793 = vset.pattern.permute.xlu0 0
        %794 = vperm.xlu0 %793, %v508
        %v795 = vpop.permute.xlu0 %794
        %798 = vset.pattern.permute.xlu0 0
        %799 = vperm.xlu0 %798, %v509
        %v800 = vpop.permute.xlu0 %799
        %803 = vset.pattern.permute.xlu0 0
        %804 = vperm.xlu0 %803, %v510
        %v805 = vpop.permute.xlu0 %804
        %808 = vset.pattern.permute.xlu0 0
        %809 = vperm.xlu0 %808, %v511
        %v810 = vpop.permute.xlu0 %809
        %813 = vset.pattern.permute.xlu0 0
        %814 = vperm.xlu0 %813, %v512
        %v815 = vpop.permute.xlu0 %814
        %818 = vset.pattern.permute.xlu0 0
        %819 = vperm.xlu0 %818, %v513
        %v820 = vpop.permute.xlu0 %819
        %823 = vset.pattern.permute.xlu0 0
        %824 = vperm.xlu0 %823, %v514
        %v825 = vpop.permute.xlu0 %824
        %828 = vset.pattern.permute.xlu0 0
        %829 = vperm.xlu0 %828, %v515
        %v830 = vpop.permute.xlu0 %829
        %833 = vset.pattern.permute.xlu0 0
        %834 = vperm.xlu0 %833, %v516
        %v835 = vpop.permute.xlu0 %834
        %vm837 = vcmask 130048
        %838 = vst.msk [vmem:[%s449] sm:$0xff] %vm837, %v520
        %839 = vst.msk [vmem:[%s449 + $0x8] sm:$0xff] %vm837, %v525
        %840 = vst.msk [vmem:[%s449 + $0x10] sm:$0xff] %vm837, %v530
        %841 = vst.msk [vmem:[%s449 + $0x18] sm:$0xff] %vm837, %v535
        %842 = vst.msk [vmem:[%s449 + $0x20] sm:$0xff] %vm837, %v540
        %843 = vst.msk [vmem:[%s449 + $0x28] sm:$0xff] %vm837, %v545
        %844 = vst.msk [vmem:[%s449 + $0x30] sm:$0xff] %vm837, %v550
        %845 = vst.msk [vmem:[%s449 + $0x38] sm:$0xff] %vm837, %v555
        %846 = vst.msk [vmem:[%s449 + $0x40] sm:$0xff] %vm837, %v560
        %847 = vst.msk [vmem:[%s449 + $0x48] sm:$0xff] %vm837, %v565
        %848 = vst.msk [vmem:[%s449 + $0x50] sm:$0xff] %vm837, %v570
        %849 = vst.msk [vmem:[%s449 + $0x58] sm:$0xff] %vm837, %v575
        %850 = vst.msk [vmem:[%s449 + $0x60] sm:$0xff] %vm837, %v580
        %851 = vst.msk [vmem:[%s449 + $0x68] sm:$0xff] %vm837, %v585
        %852 = vst.msk [vmem:[%s449 + $0x70] sm:$0xff] %vm837, %v590
        %853 = vst.msk [vmem:[%s449 + $0x78] sm:$0xff] %vm837, %v595
        %854 = vst.msk [vmem:[%s449 + $0x80] sm:$0xff] %vm837, %v600
        %855 = vst.msk [vmem:[%s449 + $0x88] sm:$0xff] %vm837, %v605
        %856 = vst.msk [vmem:[%s449 + $0x90] sm:$0xff] %vm837, %v610
        %857 = vst.msk [vmem:[%s449 + $0x98] sm:$0xff] %vm837, %v615
        %858 = vst.msk [vmem:[%s449 + $0xa0] sm:$0xff] %vm837, %v620
        %859 = vst.msk [vmem:[%s449 + $0xa8] sm:$0xff] %vm837, %v625
        %860 = vst.msk [vmem:[%s449 + $0xb0] sm:$0xff] %vm837, %v630
        %861 = vst.msk [vmem:[%s449 + $0xb8] sm:$0xff] %vm837, %v635
        %862 = vst.msk [vmem:[%s449 + $0xc0] sm:$0xff] %vm837, %v640
        %863 = vst.msk [vmem:[%s449 + $0xc8] sm:$0xff] %vm837, %v645
        %864 = vst.msk [vmem:[%s449 + $0xd0] sm:$0xff] %vm837, %v650
        %865 = vst.msk [vmem:[%s449 + $0xd8] sm:$0xff] %vm837, %v655
        %866 = vst.msk [vmem:[%s449 + $0xe0] sm:$0xff] %vm837, %v660
        %867 = vst.msk [vmem:[%s449 + $0xe8] sm:$0xff] %vm837, %v665
        %868 = vst.msk [vmem:[%s449 + $0xf0] sm:$0xff] %vm837, %v670
        %869 = vst.msk [vmem:[%s449 + $0xf8] sm:$0xff] %vm837, %v675
        %870 = vst.msk [vmem:[%s449 + $0x100] sm:$0xff] %vm837, %v680
        %871 = vst.msk [vmem:[%s449 + $0x108] sm:$0xff] %vm837, %v685
        %872 = vst.msk [vmem:[%s449 + $0x110] sm:$0xff] %vm837, %v690
        %873 = vst.msk [vmem:[%s449 + $0x118] sm:$0xff] %vm837, %v695
        %874 = vst.msk [vmem:[%s449 + $0x120] sm:$0xff] %vm837, %v700
        %875 = vst.msk [vmem:[%s449 + $0x128] sm:$0xff] %vm837, %v705
        %876 = vst.msk [vmem:[%s449 + $0x130] sm:$0xff] %vm837, %v710
        %877 = vst.msk [vmem:[%s449 + $0x138] sm:$0xff] %vm837, %v715
        %878 = vst.msk [vmem:[%s449 + $0x140] sm:$0xff] %vm837, %v720
        %879 = vst.msk [vmem:[%s449 + $0x148] sm:$0xff] %vm837, %v725
        %880 = vst.msk [vmem:[%s449 + $0x150] sm:$0xff] %vm837, %v730
        %881 = vst.msk [vmem:[%s449 + $0x158] sm:$0xff] %vm837, %v735
        %882 = vst.msk [vmem:[%s449 + $0x160] sm:$0xff] %vm837, %v740
        %883 = vst.msk [vmem:[%s449 + $0x168] sm:$0xff] %vm837, %v745
        %884 = vst.msk [vmem:[%s449 + $0x170] sm:$0xff] %vm837, %v750
        %885 = vst.msk [vmem:[%s449 + $0x178] sm:$0xff] %vm837, %v755
        %886 = vst.msk [vmem:[%s449 + $0x180] sm:$0xff] %vm837, %v760
        %887 = vst.msk [vmem:[%s449 + $0x188] sm:$0xff] %vm837, %v765
        %888 = vst.msk [vmem:[%s449 + $0x190] sm:$0xff] %vm837, %v770
        %889 = vst.msk [vmem:[%s449 + $0x198] sm:$0xff] %vm837, %v775
        %890 = vst.msk [vmem:[%s449 + $0x1a0] sm:$0xff] %vm837, %v780
        %891 = vst.msk [vmem:[%s449 + $0x1a8] sm:$0xff] %vm837, %v785
        %892 = vst.msk [vmem:[%s449 + $0x1b0] sm:$0xff] %vm837, %v790
        %893 = vst.msk [vmem:[%s449 + $0x1b8] sm:$0xff] %vm837, %v795
        %894 = vst.msk [vmem:[%s449 + $0x1c0] sm:$0xff] %vm837, %v800
        %895 = vst.msk [vmem:[%s449 + $0x1c8] sm:$0xff] %vm837, %v805
        %896 = vst.msk [vmem:[%s449 + $0x1d0] sm:$0xff] %vm837, %v810
        %897 = vst.msk [vmem:[%s449 + $0x1d8] sm:$0xff] %vm837, %v815
        %898 = vst.msk [vmem:[%s449 + $0x1e0] sm:$0xff] %vm837, %v820
        %899 = vst.msk [vmem:[%s449 + $0x1e8] sm:$0xff] %vm837, %v825
        %900 = vst.msk [vmem:[%s449 + $0x1f0] sm:$0xff] %vm837, %v830
        %901 = vst.msk [vmem:[%s449 + $0x1f8] sm:$0xff] %vm837, %v835
        %v902 = vld [vmem:[%s452] sm:$0x1]
        %v903 = vld [vmem:[%s452 + $0x1] sm:$0x1]
        %v904 = vld [vmem:[%s452 + $0x2] sm:$0x1]
        %v905 = vld [vmem:[%s452 + $0x3] sm:$0x1]
        %v906 = vld [vmem:[%s452 + $0x4] sm:$0x1]
        %v907 = vld [vmem:[%s452 + $0x5] sm:$0x1]
        %v908 = vld [vmem:[%s452 + $0x6] sm:$0x1]
        %v909 = vld [vmem:[%s452 + $0x7] sm:$0x1]
        %v910 = vld [vmem:[%s452 + $0x8] sm:$0x1]
        %v911 = vld [vmem:[%s452 + $0x9] sm:$0x1]
        %v912 = vld [vmem:[%s452 + $0xa] sm:$0x1]
        %v913 = vld [vmem:[%s452 + $0xb] sm:$0x1]
        %v914 = vld [vmem:[%s452 + $0xc] sm:$0x1]
        %v915 = vld [vmem:[%s452 + $0xd] sm:$0x1]
        %v916 = vld [vmem:[%s452 + $0xe] sm:$0x1]
        %v917 = vld [vmem:[%s452 + $0xf] sm:$0x1]
        %v918 = vld [vmem:[%s452 + $0x10] sm:$0x1]
        %v919 = vld [vmem:[%s452 + $0x11] sm:$0x1]
        %v920 = vld [vmem:[%s452 + $0x12] sm:$0x1]
        %v921 = vld [vmem:[%s452 + $0x13] sm:$0x1]
        %v922 = vld [vmem:[%s452 + $0x14] sm:$0x1]
        %v923 = vld [vmem:[%s452 + $0x15] sm:$0x1]
        %v924 = vld [vmem:[%s452 + $0x16] sm:$0x1]
        %v925 = vld [vmem:[%s452 + $0x17] sm:$0x1]
        %v926 = vld [vmem:[%s452 + $0x18] sm:$0x1]
        %v927 = vld [vmem:[%s452 + $0x19] sm:$0x1]
        %v928 = vld [vmem:[%s452 + $0x1a] sm:$0x1]
        %v929 = vld [vmem:[%s452 + $0x1b] sm:$0x1]
        %v930 = vld [vmem:[%s452 + $0x1c] sm:$0x1]
        %v931 = vld [vmem:[%s452 + $0x1d] sm:$0x1]
        %v932 = vld [vmem:[%s452 + $0x1e] sm:$0x1]
        %v933 = vld [vmem:[%s452 + $0x1f] sm:$0x1]
        %v934 = vld [vmem:[%s452 + $0x20] sm:$0x1]
        %v935 = vld [vmem:[%s452 + $0x21] sm:$0x1]
        %v936 = vld [vmem:[%s452 + $0x22] sm:$0x1]
        %v937 = vld [vmem:[%s452 + $0x23] sm:$0x1]
        %v938 = vld [vmem:[%s452 + $0x24] sm:$0x1]
        %v939 = vld [vmem:[%s452 + $0x25] sm:$0x1]
        %v940 = vld [vmem:[%s452 + $0x26] sm:$0x1]
        %v941 = vld [vmem:[%s452 + $0x27] sm:$0x1]
        %v942 = vld [vmem:[%s452 + $0x28] sm:$0x1]
        %v943 = vld [vmem:[%s452 + $0x29] sm:$0x1]
        %v944 = vld [vmem:[%s452 + $0x2a] sm:$0x1]
        %v945 = vld [vmem:[%s452 + $0x2b] sm:$0x1]
        %v946 = vld [vmem:[%s452 + $0x2c] sm:$0x1]
        %v947 = vld [vmem:[%s452 + $0x2d] sm:$0x1]
        %v948 = vld [vmem:[%s452 + $0x2e] sm:$0x1]
        %v949 = vld [vmem:[%s452 + $0x2f] sm:$0x1]
        %v950 = vld [vmem:[%s452 + $0x30] sm:$0x1]
        %v951 = vld [vmem:[%s452 + $0x31] sm:$0x1]
        %v952 = vld [vmem:[%s452 + $0x32] sm:$0x1]
        %v953 = vld [vmem:[%s452 + $0x33] sm:$0x1]
        %v954 = vld [vmem:[%s452 + $0x34] sm:$0x1]
        %v955 = vld [vmem:[%s452 + $0x35] sm:$0x1]
        %v956 = vld [vmem:[%s452 + $0x36] sm:$0x1]
        %v957 = vld [vmem:[%s452 + $0x37] sm:$0x1]
        %v958 = vld [vmem:[%s452 + $0x38] sm:$0x1]
        %v959 = vld [vmem:[%s452 + $0x39] sm:$0x1]
        %v960 = vld [vmem:[%s452 + $0x3a] sm:$0x1]
        %v961 = vld [vmem:[%s452 + $0x3b] sm:$0x1]
        %v962 = vld [vmem:[%s452 + $0x3c] sm:$0x1]
        %v963 = vld [vmem:[%s452 + $0x3d] sm:$0x1]
        %v964 = vld [vmem:[%s452 + $0x3e] sm:$0x1]
        %v965 = vld [vmem:[%s452 + $0x3f] sm:$0x1]
        %v1030 = vlaneseq
        %v1031 = vshrl.u32 %v1030, 7
        %v1032 = vsub.s32 0, %v1031
        %v1033 = vrot.slane %v902, %v1032
        %v1034 = vlaneseq
        %v1035 = vshrl.u32 %v1034, 7
        %v1036 = vsub.s32 0, %v1035
        %v1037 = vrot.slane %v903, %v1036
        %v1038 = vlaneseq
        %v1039 = vshrl.u32 %v1038, 7
        %v1040 = vsub.s32 0, %v1039
        %v1041 = vrot.slane %v904, %v1040
        %v1042 = vlaneseq
        %v1043 = vshrl.u32 %v1042, 7
        %v1044 = vsub.s32 0, %v1043
        %v1045 = vrot.slane %v905, %v1044
        %v1046 = vlaneseq
        %v1047 = vshrl.u32 %v1046, 7
        %v1048 = vsub.s32 0, %v1047
        %v1049 = vrot.slane %v906, %v1048
        %v1050 = vlaneseq
        %v1051 = vshrl.u32 %v1050, 7
        %v1052 = vsub.s32 0, %v1051
        %v1053 = vrot.slane %v907, %v1052
        %v1054 = vlaneseq
        %v1055 = vshrl.u32 %v1054, 7
        %v1056 = vsub.s32 0, %v1055
        %v1057 = vrot.slane %v908, %v1056
        %v1058 = vlaneseq
        %v1059 = vshrl.u32 %v1058, 7
        %v1060 = vsub.s32 0, %v1059
        %v1061 = vrot.slane %v909, %v1060
        %v1062 = vlaneseq
        %v1063 = vshrl.u32 %v1062, 7
        %v1064 = vsub.s32 0, %v1063
        %v1065 = vrot.slane %v910, %v1064
        %v1066 = vlaneseq
        %v1067 = vshrl.u32 %v1066, 7
        %v1068 = vsub.s32 0, %v1067
        %v1069 = vrot.slane %v911, %v1068
        %v1070 = vlaneseq
        %v1071 = vshrl.u32 %v1070, 7
        %v1072 = vsub.s32 0, %v1071
        %v1073 = vrot.slane %v912, %v1072
        %v1074 = vlaneseq
        %v1075 = vshrl.u32 %v1074, 7
        %v1076 = vsub.s32 0, %v1075
        %v1077 = vrot.slane %v913, %v1076
        %v1078 = vlaneseq
        %v1079 = vshrl.u32 %v1078, 7
        %v1080 = vsub.s32 0, %v1079
        %v1081 = vrot.slane %v914, %v1080
        %v1082 = vlaneseq
        %v1083 = vshrl.u32 %v1082, 7
        %v1084 = vsub.s32 0, %v1083
        %v1085 = vrot.slane %v915, %v1084
        %v1086 = vlaneseq
        %v1087 = vshrl.u32 %v1086, 7
        %v1088 = vsub.s32 0, %v1087
        %v1089 = vrot.slane %v916, %v1088
        %v1090 = vlaneseq
        %v1091 = vshrl.u32 %v1090, 7
        %v1092 = vsub.s32 0, %v1091
        %v1093 = vrot.slane %v917, %v1092
        %v1094 = vlaneseq
        %v1095 = vshrl.u32 %v1094, 7
        %v1096 = vsub.s32 0, %v1095
        %v1097 = vrot.slane %v918, %v1096
        %v1098 = vlaneseq
        %v1099 = vshrl.u32 %v1098, 7
        %v1100 = vsub.s32 0, %v1099
        %v1101 = vrot.slane %v919, %v1100
        %v1102 = vlaneseq
        %v1103 = vshrl.u32 %v1102, 7
        %v1104 = vsub.s32 0, %v1103
        %v1105 = vrot.slane %v920, %v1104
        %v1106 = vlaneseq
        %v1107 = vshrl.u32 %v1106, 7
        %v1108 = vsub.s32 0, %v1107
        %v1109 = vrot.slane %v921, %v1108
        %v1110 = vlaneseq
        %v1111 = vshrl.u32 %v1110, 7
        %v1112 = vsub.s32 0, %v1111
        %v1113 = vrot.slane %v922, %v1112
        %v1114 = vlaneseq
        %v1115 = vshrl.u32 %v1114, 7
        %v1116 = vsub.s32 0, %v1115
        %v1117 = vrot.slane %v923, %v1116
        %v1118 = vlaneseq
        %v1119 = vshrl.u32 %v1118, 7
        %v1120 = vsub.s32 0, %v1119
        %v1121 = vrot.slane %v924, %v1120
        %v1122 = vlaneseq
        %v1123 = vshrl.u32 %v1122, 7
        %v1124 = vsub.s32 0, %v1123
        %v1125 = vrot.slane %v925, %v1124
        %v1126 = vlaneseq
        %v1127 = vshrl.u32 %v1126, 7
        %v1128 = vsub.s32 0, %v1127
        %v1129 = vrot.slane %v926, %v1128
        %v1130 = vlaneseq
        %v1131 = vshrl.u32 %v1130, 7
        %v1132 = vsub.s32 0, %v1131
        %v1133 = vrot.slane %v927, %v1132
        %v1134 = vlaneseq
        %v1135 = vshrl.u32 %v1134, 7
        %v1136 = vsub.s32 0, %v1135
        %v1137 = vrot.slane %v928, %v1136
        %v1138 = vlaneseq
        %v1139 = vshrl.u32 %v1138, 7
        %v1140 = vsub.s32 0, %v1139
        %v1141 = vrot.slane %v929, %v1140
        %v1142 = vlaneseq
        %v1143 = vshrl.u32 %v1142, 7
        %v1144 = vsub.s32 0, %v1143
        %v1145 = vrot.slane %v930, %v1144
        %v1146 = vlaneseq
        %v1147 = vshrl.u32 %v1146, 7
        %v1148 = vsub.s32 0, %v1147
        %v1149 = vrot.slane %v931, %v1148
        %v1150 = vlaneseq
        %v1151 = vshrl.u32 %v1150, 7
        %v1152 = vsub.s32 0, %v1151
        %v1153 = vrot.slane %v932, %v1152
        %v1154 = vlaneseq
        %v1155 = vshrl.u32 %v1154, 7
        %v1156 = vsub.s32 0, %v1155
        %v1157 = vrot.slane %v933, %v1156
        %v1158 = vlaneseq
        %v1159 = vshrl.u32 %v1158, 7
        %v1160 = vsub.s32 0, %v1159
        %v1161 = vrot.slane %v934, %v1160
        %v1162 = vlaneseq
        %v1163 = vshrl.u32 %v1162, 7
        %v1164 = vsub.s32 0, %v1163
        %v1165 = vrot.slane %v935, %v1164
        %v1166 = vlaneseq
        %v1167 = vshrl.u32 %v1166, 7
        %v1168 = vsub.s32 0, %v1167
        %v1169 = vrot.slane %v936, %v1168
        %v1170 = vlaneseq
        %v1171 = vshrl.u32 %v1170, 7
        %v1172 = vsub.s32 0, %v1171
        %v1173 = vrot.slane %v937, %v1172
        %v1174 = vlaneseq
        %v1175 = vshrl.u32 %v1174, 7
        %v1176 = vsub.s32 0, %v1175
        %v1177 = vrot.slane %v938, %v1176
        %v1178 = vlaneseq
        %v1179 = vshrl.u32 %v1178, 7
        %v1180 = vsub.s32 0, %v1179
        %v1181 = vrot.slane %v939, %v1180
        %v1182 = vlaneseq
        %v1183 = vshrl.u32 %v1182, 7
        %v1184 = vsub.s32 0, %v1183
        %v1185 = vrot.slane %v940, %v1184
        %v1186 = vlaneseq
        %v1187 = vshrl.u32 %v1186, 7
        %v1188 = vsub.s32 0, %v1187
        %v1189 = vrot.slane %v941, %v1188
        %v1190 = vlaneseq
        %v1191 = vshrl.u32 %v1190, 7
        %v1192 = vsub.s32 0, %v1191
        %v1193 = vrot.slane %v942, %v1192
        %v1194 = vlaneseq
        %v1195 = vshrl.u32 %v1194, 7
        %v1196 = vsub.s32 0, %v1195
        %v1197 = vrot.slane %v943, %v1196
        %v1198 = vlaneseq
        %v1199 = vshrl.u32 %v1198, 7
        %v1200 = vsub.s32 0, %v1199
        %v1201 = vrot.slane %v944, %v1200
        %v1202 = vlaneseq
        %v1203 = vshrl.u32 %v1202, 7
        %v1204 = vsub.s32 0, %v1203
        %v1205 = vrot.slane %v945, %v1204
        %v1206 = vlaneseq
        %v1207 = vshrl.u32 %v1206, 7
        %v1208 = vsub.s32 0, %v1207
        %v1209 = vrot.slane %v946, %v1208
        %v1210 = vlaneseq
        %v1211 = vshrl.u32 %v1210, 7
        %v1212 = vsub.s32 0, %v1211
        %v1213 = vrot.slane %v947, %v1212
        %v1214 = vlaneseq
        %v1215 = vshrl.u32 %v1214, 7
        %v1216 = vsub.s32 0, %v1215
        %v1217 = vrot.slane %v948, %v1216
        %v1218 = vlaneseq
        %v1219 = vshrl.u32 %v1218, 7
        %v1220 = vsub.s32 0, %v1219
        %v1221 = vrot.slane %v949, %v1220
        %v1222 = vlaneseq
        %v1223 = vshrl.u32 %v1222, 7
        %v1224 = vsub.s32 0, %v1223
        %v1225 = vrot.slane %v950, %v1224
        %v1226 = vlaneseq
        %v1227 = vshrl.u32 %v1226, 7
        %v1228 = vsub.s32 0, %v1227
        %v1229 = vrot.slane %v951, %v1228
        %v1230 = vlaneseq
        %v1231 = vshrl.u32 %v1230, 7
        %v1232 = vsub.s32 0, %v1231
        %v1233 = vrot.slane %v952, %v1232
        %v1234 = vlaneseq
        %v1235 = vshrl.u32 %v1234, 7
        %v1236 = vsub.s32 0, %v1235
        %v1237 = vrot.slane %v953, %v1236
        %v1238 = vlaneseq
        %v1239 = vshrl.u32 %v1238, 7
        %v1240 = vsub.s32 0, %v1239
        %v1241 = vrot.slane %v954, %v1240
        %v1242 = vlaneseq
        %v1243 = vshrl.u32 %v1242, 7
        %v1244 = vsub.s32 0, %v1243
        %v1245 = vrot.slane %v955, %v1244
        %v1246 = vlaneseq
        %v1247 = vshrl.u32 %v1246, 7
        %v1248 = vsub.s32 0, %v1247
        %v1249 = vrot.slane %v956, %v1248
        %v1250 = vlaneseq
        %v1251 = vshrl.u32 %v1250, 7
        %v1252 = vsub.s32 0, %v1251
        %v1253 = vrot.slane %v957, %v1252
        %v1254 = vlaneseq
        %v1255 = vshrl.u32 %v1254, 7
        %v1256 = vsub.s32 0, %v1255
        %v1257 = vrot.slane %v958, %v1256
        %v1258 = vlaneseq
        %v1259 = vshrl.u32 %v1258, 7
        %v1260 = vsub.s32 0, %v1259
        %v1261 = vrot.slane %v959, %v1260
        %v1262 = vlaneseq
        %v1263 = vshrl.u32 %v1262, 7
        %v1264 = vsub.s32 0, %v1263
        %v1265 = vrot.slane %v960, %v1264
        %v1266 = vlaneseq
        %v1267 = vshrl.u32 %v1266, 7
        %v1268 = vsub.s32 0, %v1267
        %v1269 = vrot.slane %v961, %v1268
        %v1270 = vlaneseq
        %v1271 = vshrl.u32 %v1270, 7
        %v1272 = vsub.s32 0, %v1271
        %v1273 = vrot.slane %v962, %v1272
        %v1274 = vlaneseq
        %v1275 = vshrl.u32 %v1274, 7
        %v1276 = vsub.s32 0, %v1275
        %v1277 = vrot.slane %v963, %v1276
        %v1278 = vlaneseq
        %v1279 = vshrl.u32 %v1278, 7
        %v1280 = vsub.s32 0, %v1279
        %v1281 = vrot.slane %v964, %v1280
        %v1282 = vlaneseq
        %v1283 = vshrl.u32 %v1282, 7
        %v1284 = vsub.s32 0, %v1283
        %v1285 = vrot.slane %v965, %v1284
        %s1350 = scalar_lea.vmem %s449, 512 [#allocation3]
        %1351 = vst.msk [vmem:[%s1350] sm:$0xff] %vm837, %v1033
        %1352 = vst.msk [vmem:[%s1350 + $0x8] sm:$0xff] %vm837, %v1037
        %1353 = vst.msk [vmem:[%s1350 + $0x10] sm:$0xff] %vm837, %v1041
        %1354 = vst.msk [vmem:[%s1350 + $0x18] sm:$0xff] %vm837, %v1045
        %1355 = vst.msk [vmem:[%s1350 + $0x20] sm:$0xff] %vm837, %v1049
        %1356 = vst.msk [vmem:[%s1350 + $0x28] sm:$0xff] %vm837, %v1053
        %1357 = vst.msk [vmem:[%s1350 + $0x30] sm:$0xff] %vm837, %v1057
        %1358 = vst.msk [vmem:[%s1350 + $0x38] sm:$0xff] %vm837, %v1061
        %1359 = vst.msk [vmem:[%s1350 + $0x40] sm:$0xff] %vm837, %v1065
        %1360 = vst.msk [vmem:[%s1350 + $0x48] sm:$0xff] %vm837, %v1069
        %1361 = vst.msk [vmem:[%s1350 + $0x50] sm:$0xff] %vm837, %v1073
        %1362 = vst.msk [vmem:[%s1350 + $0x58] sm:$0xff] %vm837, %v1077
        %1363 = vst.msk [vmem:[%s1350 + $0x60] sm:$0xff] %vm837, %v1081
        %1364 = vst.msk [vmem:[%s1350 + $0x68] sm:$0xff] %vm837, %v1085
        %1365 = vst.msk [vmem:[%s1350 + $0x70] sm:$0xff] %vm837, %v1089
        %1366 = vst.msk [vmem:[%s1350 + $0x78] sm:$0xff] %vm837, %v1093
        %1367 = vst.msk [vmem:[%s1350 + $0x80] sm:$0xff] %vm837, %v1097
        %1368 = vst.msk [vmem:[%s1350 + $0x88] sm:$0xff] %vm837, %v1101
        %1369 = vst.msk [vmem:[%s1350 + $0x90] sm:$0xff] %vm837, %v1105
        %1370 = vst.msk [vmem:[%s1350 + $0x98] sm:$0xff] %vm837, %v1109
        %1371 = vst.msk [vmem:[%s1350 + $0xa0] sm:$0xff] %vm837, %v1113
        %1372 = vst.msk [vmem:[%s1350 + $0xa8] sm:$0xff] %vm837, %v1117
        %1373 = vst.msk [vmem:[%s1350 + $0xb0] sm:$0xff] %vm837, %v1121
        %1374 = vst.msk [vmem:[%s1350 + $0xb8] sm:$0xff] %vm837, %v1125
        %1375 = vst.msk [vmem:[%s1350 + $0xc0] sm:$0xff] %vm837, %v1129
        %1376 = vst.msk [vmem:[%s1350 + $0xc8] sm:$0xff] %vm837, %v1133
        %1377 = vst.msk [vmem:[%s1350 + $0xd0] sm:$0xff] %vm837, %v1137
        %1378 = vst.msk [vmem:[%s1350 + $0xd8] sm:$0xff] %vm837, %v1141
        %1379 = vst.msk [vmem:[%s1350 + $0xe0] sm:$0xff] %vm837, %v1145
        %1380 = vst.msk [vmem:[%s1350 + $0xe8] sm:$0xff] %vm837, %v1149
        %1381 = vst.msk [vmem:[%s1350 + $0xf0] sm:$0xff] %vm837, %v1153
        %1382 = vst.msk [vmem:[%s1350 + $0xf8] sm:$0xff] %vm837, %v1157
        %1383 = vst.msk [vmem:[%s1350 + $0x100] sm:$0xff] %vm837, %v1161
        %1384 = vst.msk [vmem:[%s1350 + $0x108] sm:$0xff] %vm837, %v1165
        %1385 = vst.msk [vmem:[%s1350 + $0x110] sm:$0xff] %vm837, %v1169
        %1386 = vst.msk [vmem:[%s1350 + $0x118] sm:$0xff] %vm837, %v1173
        %1387 = vst.msk [vmem:[%s1350 + $0x120] sm:$0xff] %vm837, %v1177
        %1388 = vst.msk [vmem:[%s1350 + $0x128] sm:$0xff] %vm837, %v1181
        %1389 = vst.msk [vmem:[%s1350 + $0x130] sm:$0xff] %vm837, %v1185
        %1390 = vst.msk [vmem:[%s1350 + $0x138] sm:$0xff] %vm837, %v1189
        %1391 = vst.msk [vmem:[%s1350 + $0x140] sm:$0xff] %vm837, %v1193
        %1392 = vst.msk [vmem:[%s1350 + $0x148] sm:$0xff] %vm837, %v1197
        %1393 = vst.msk [vmem:[%s1350 + $0x150] sm:$0xff] %vm837, %v1201
        %1394 = vst.msk [vmem:[%s1350 + $0x158] sm:$0xff] %vm837, %v1205
        %1395 = vst.msk [vmem:[%s1350 + $0x160] sm:$0xff] %vm837, %v1209
        %1396 = vst.msk [vmem:[%s1350 + $0x168] sm:$0xff] %vm837, %v1213
        %1397 = vst.msk [vmem:[%s1350 + $0x170] sm:$0xff] %vm837, %v1217
        %1398 = vst.msk [vmem:[%s1350 + $0x178] sm:$0xff] %vm837, %v1221
        %1399 = vst.msk [vmem:[%s1350 + $0x180] sm:$0xff] %vm837, %v1225
        %1400 = vst.msk [vmem:[%s1350 + $0x188] sm:$0xff] %vm837, %v1229
        %1401 = vst.msk [vmem:[%s1350 + $0x190] sm:$0xff] %vm837, %v1233
        %1402 = vst.msk [vmem:[%s1350 + $0x198] sm:$0xff] %vm837, %v1237
        %1403 = vst.msk [vmem:[%s1350 + $0x1a0] sm:$0xff] %vm837, %v1241
        %1404 = vst.msk [vmem:[%s1350 + $0x1a8] sm:$0xff] %vm837, %v1245
        %1405 = vst.msk [vmem:[%s1350 + $0x1b0] sm:$0xff] %vm837, %v1249
        %1406 = vst.msk [vmem:[%s1350 + $0x1b8] sm:$0xff] %vm837, %v1253
        %1407 = vst.msk [vmem:[%s1350 + $0x1c0] sm:$0xff] %vm837, %v1257
        %1408 = vst.msk [vmem:[%s1350 + $0x1c8] sm:$0xff] %vm837, %v1261
        %1409 = vst.msk [vmem:[%s1350 + $0x1d0] sm:$0xff] %vm837, %v1265
        %1410 = vst.msk [vmem:[%s1350 + $0x1d8] sm:$0xff] %vm837, %v1269
        %1411 = vst.msk [vmem:[%s1350 + $0x1e0] sm:$0xff] %vm837, %v1273
        %1412 = vst.msk [vmem:[%s1350 + $0x1e8] sm:$0xff] %vm837, %v1277
        %1413 = vst.msk [vmem:[%s1350 + $0x1f0] sm:$0xff] %vm837, %v1281
        %1414 = vst.msk [vmem:[%s1350 + $0x1f8] sm:$0xff] %vm837, %v1285
        %s1415 = sand.u32 %s87, 1
        %s1416 = sand.u32 %s87, 1
        %s1417 = smul.addr %s1416, 1024
        %s1418 = scalar_lea.vmem [#allocation3], %s1417
        // Predicated region
        $region67: #{tpu_custom_call.1} parent=61 // pred_check
          %p1419 = pneg %p97
        $region68: #{tpu_custom_call.1} parent=61 // pred_check_branch
          %1421 = sbr.rel (%p1419) target = $region70
        $region69: #{tpu_custom_call.1} parent=61 // pred_region
          %s1422 = sadd.s32 %s18, %s17
          %s1423 = smul.addr %s1422, 8
          %s1424 = scalar_lea.vmem %s2, %s1423
          // Predicated region
          $region71: #{tpu_custom_call.1} parent=69 // pred_check
            _
          $region72: #{tpu_custom_call.1} parent=69 // pred_check_branch
            %1426 = sbr.rel (0) target = $region74
          $region73: #{tpu_custom_call.1} parent=69 // pred_region
            // Predicated region
            $region75: #{tpu_custom_call.1} parent=73 // pred_check
              _
            $region76: #{tpu_custom_call.1} parent=73 // pred_check_branch
              %1428 = sbr.rel (0) target = $region78
            $region77: #{tpu_custom_call.1} parent=73 // pred_region
              // Predicated region
              $region90: #{tpu_custom_call.1} parent=77 // pred_check
                _
              $region91: #{tpu_custom_call.1} parent=77 // pred_check_branch
                %1698 = sbr.rel (0) target = $region93
              $region92: #{tpu_custom_call.1} parent=77 // pred_region
                loop: start=0, step=1, limit=1
                $region94: #{tpu_custom_call.1} parent=92 // loop_pre_header
                  _
                $region95: #{tpu_custom_call.1} parent=92 // loop_header
                  %s1700 = sphi 0, %s1704
                  %p1701 = scmp.ge.s32.totalorder %s1700, 1
                  %s1705 = sphi %s1418, %s1418
                  %s1706 = sphi %s1424, %s1424
                $region96: #{tpu_custom_call.1} parent=92 // loop_header_branch
                  %1703 = sbr.rel (%p1701) target = $region100
                $region97: #{tpu_custom_call.1} parent=92 // loop_body
                  %v1707 = vld [vmem:[%s1705] sm:$0xff]
                  %1708 = vst [vmem:[%s1706] sm:$0xff] %v1707
                  %v1709 = vld [vmem:[%s1705 + $0x8] sm:$0xff]
                  %1710 = vst [vmem:[%s1706 + $0x10] sm:$0xff] %v1709
                  %v1711 = vld [vmem:[%s1705 + $0x10] sm:$0xff]
                  %1712 = vst [vmem:[%s1706 + $0x20] sm:$0xff] %v1711
                  %v1713 = vld [vmem:[%s1705 + $0x18] sm:$0xff]
                  %1714 = vst [vmem:[%s1706 + $0x30] sm:$0xff] %v1713
                  %v1715 = vld [vmem:[%s1705 + $0x20] sm:$0xff]
                  %1716 = vst [vmem:[%s1706 + $0x40] sm:$0xff] %v1715
                  %v1717 = vld [vmem:[%s1705 + $0x28] sm:$0xff]
                  %1718 = vst [vmem:[%s1706 + $0x50] sm:$0xff] %v1717
                  %v1719 = vld [vmem:[%s1705 + $0x30] sm:$0xff]
                  %1720 = vst [vmem:[%s1706 + $0x60] sm:$0xff] %v1719
                  %v1721 = vld [vmem:[%s1705 + $0x38] sm:$0xff]
                  %1722 = vst [vmem:[%s1706 + $0x70] sm:$0xff] %v1721
                  %v1723 = vld [vmem:[%s1705 + $0x40] sm:$0xff]
                  %1724 = vst [vmem:[%s1706 + $0x80] sm:$0xff] %v1723
                  %v1725 = vld [vmem:[%s1705 + $0x48] sm:$0xff]
                  %1726 = vst [vmem:[%s1706 + $0x90] sm:$0xff] %v1725
                  %v1727 = vld [vmem:[%s1705 + $0x50] sm:$0xff]
                  %1728 = vst [vmem:[%s1706 + $0xa0] sm:$0xff] %v1727
                  %v1729 = vld [vmem:[%s1705 + $0x58] sm:$0xff]
                  %1730 = vst [vmem:[%s1706 + $0xb0] sm:$0xff] %v1729
                  %v1731 = vld [vmem:[%s1705 + $0x60] sm:$0xff]
                  %1732 = vst [vmem:[%s1706 + $0xc0] sm:$0xff] %v1731
                  %v1733 = vld [vmem:[%s1705 + $0x68] sm:$0xff]
                  %1734 = vst [vmem:[%s1706 + $0xd0] sm:$0xff] %v1733
                  %v1735 = vld [vmem:[%s1705 + $0x70] sm:$0xff]
                  %1736 = vst [vmem:[%s1706 + $0xe0] sm:$0xff] %v1735
                  %v1737 = vld [vmem:[%s1705 + $0x78] sm:$0xff]
                  %1738 = vst [vmem:[%s1706 + $0xf0] sm:$0xff] %v1737
                  %v1739 = vld [vmem:[%s1705 + $0x80] sm:$0xff]
                  %1740 = vst [vmem:[%s1706 + $0x100] sm:$0xff] %v1739
                  %v1741 = vld [vmem:[%s1705 + $0x88] sm:$0xff]
                  %1742 = vst [vmem:[%s1706 + $0x110] sm:$0xff] %v1741
                  %v1743 = vld [vmem:[%s1705 + $0x90] sm:$0xff]
                  %1744 = vst [vmem:[%s1706 + $0x120] sm:$0xff] %v1743
                  %v1745 = vld [vmem:[%s1705 + $0x98] sm:$0xff]
                  %1746 = vst [vmem:[%s1706 + $0x130] sm:$0xff] %v1745
                  %v1747 = vld [vmem:[%s1705 + $0xa0] sm:$0xff]
                  %1748 = vst [vmem:[%s1706 + $0x140] sm:$0xff] %v1747
                  %v1749 = vld [vmem:[%s1705 + $0xa8] sm:$0xff]
                  %1750 = vst [vmem:[%s1706 + $0x150] sm:$0xff] %v1749
                  %v1751 = vld [vmem:[%s1705 + $0xb0] sm:$0xff]
                  %1752 = vst [vmem:[%s1706 + $0x160] sm:$0xff] %v1751
                  %v1753 = vld [vmem:[%s1705 + $0xb8] sm:$0xff]
                  %1754 = vst [vmem:[%s1706 + $0x170] sm:$0xff] %v1753
                  %v1755 = vld [vmem:[%s1705 + $0xc0] sm:$0xff]
                  %1756 = vst [vmem:[%s1706 + $0x180] sm:$0xff] %v1755
                  %v1757 = vld [vmem:[%s1705 + $0xc8] sm:$0xff]
                  %1758 = vst [vmem:[%s1706 + $0x190] sm:$0xff] %v1757
                  %v1759 = vld [vmem:[%s1705 + $0xd0] sm:$0xff]
                  %1760 = vst [vmem:[%s1706 + $0x1a0] sm:$0xff] %v1759
                  %v1761 = vld [vmem:[%s1705 + $0xd8] sm:$0xff]
                  %1762 = vst [vmem:[%s1706 + $0x1b0] sm:$0xff] %v1761
                  %v1763 = vld [vmem:[%s1705 + $0xe0] sm:$0xff]
                  %1764 = vst [vmem:[%s1706 + $0x1c0] sm:$0xff] %v1763
                  %v1765 = vld [vmem:[%s1705 + $0xe8] sm:$0xff]
                  %1766 = vst [vmem:[%s1706 + $0x1d0] sm:$0xff] %v1765
                  %v1767 = vld [vmem:[%s1705 + $0xf0] sm:$0xff]
                  %1768 = vst [vmem:[%s1706 + $0x1e0] sm:$0xff] %v1767
                  %v1769 = vld [vmem:[%s1705 + $0xf8] sm:$0xff]
                  %1770 = vst [vmem:[%s1706 + $0x1f0] sm:$0xff] %v1769
                  %v1771 = vld [vmem:[%s1705 + $0x100] sm:$0xff]
                  %1772 = vst [vmem:[%s1706 + $0x200] sm:$0xff] %v1771
                  %v1773 = vld [vmem:[%s1705 + $0x108] sm:$0xff]
                  %1774 = vst [vmem:[%s1706 + $0x210] sm:$0xff] %v1773
                  %v1775 = vld [vmem:[%s1705 + $0x110] sm:$0xff]
                  %1776 = vst [vmem:[%s1706 + $0x220] sm:$0xff] %v1775
                  %v1777 = vld [vmem:[%s1705 + $0x118] sm:$0xff]
                  %1778 = vst [vmem:[%s1706 + $0x230] sm:$0xff] %v1777
                  %v1779 = vld [vmem:[%s1705 + $0x120] sm:$0xff]
                  %1780 = vst [vmem:[%s1706 + $0x240] sm:$0xff] %v1779
                  %v1781 = vld [vmem:[%s1705 + $0x128] sm:$0xff]
                  %1782 = vst [vmem:[%s1706 + $0x250] sm:$0xff] %v1781
                  %v1783 = vld [vmem:[%s1705 + $0x130] sm:$0xff]
                  %1784 = vst [vmem:[%s1706 + $0x260] sm:$0xff] %v1783
                  %v1785 = vld [vmem:[%s1705 + $0x138] sm:$0xff]
                  %1786 = vst [vmem:[%s1706 + $0x270] sm:$0xff] %v1785
                  %v1787 = vld [vmem:[%s1705 + $0x140] sm:$0xff]
                  %1788 = vst [vmem:[%s1706 + $0x280] sm:$0xff] %v1787
                  %v1789 = vld [vmem:[%s1705 + $0x148] sm:$0xff]
                  %1790 = vst [vmem:[%s1706 + $0x290] sm:$0xff] %v1789
                  %v1791 = vld [vmem:[%s1705 + $0x150] sm:$0xff]
                  %1792 = vst [vmem:[%s1706 + $0x2a0] sm:$0xff] %v1791
                  %v1793 = vld [vmem:[%s1705 + $0x158] sm:$0xff]
                  %1794 = vst [vmem:[%s1706 + $0x2b0] sm:$0xff] %v1793
                  %v1795 = vld [vmem:[%s1705 + $0x160] sm:$0xff]
                  %1796 = vst [vmem:[%s1706 + $0x2c0] sm:$0xff] %v1795
                  %v1797 = vld [vmem:[%s1705 + $0x168] sm:$0xff]
                  %1798 = vst [vmem:[%s1706 + $0x2d0] sm:$0xff] %v1797
                  %v1799 = vld [vmem:[%s1705 + $0x170] sm:$0xff]
                  %1800 = vst [vmem:[%s1706 + $0x2e0] sm:$0xff] %v1799
                  %v1801 = vld [vmem:[%s1705 + $0x178] sm:$0xff]
                  %1802 = vst [vmem:[%s1706 + $0x2f0] sm:$0xff] %v1801
                  %v1803 = vld [vmem:[%s1705 + $0x180] sm:$0xff]
                  %1804 = vst [vmem:[%s1706 + $0x300] sm:$0xff] %v1803
                  %v1805 = vld [vmem:[%s1705 + $0x188] sm:$0xff]
                  %1806 = vst [vmem:[%s1706 + $0x310] sm:$0xff] %v1805
                  %v1807 = vld [vmem:[%s1705 + $0x190] sm:$0xff]
                  %1808 = vst [vmem:[%s1706 + $0x320] sm:$0xff] %v1807
                  %v1809 = vld [vmem:[%s1705 + $0x198] sm:$0xff]
                  %1810 = vst [vmem:[%s1706 + $0x330] sm:$0xff] %v1809
                  %v1811 = vld [vmem:[%s1705 + $0x1a0] sm:$0xff]
                  %1812 = vst [vmem:[%s1706 + $0x340] sm:$0xff] %v1811
                  %v1813 = vld [vmem:[%s1705 + $0x1a8] sm:$0xff]
                  %1814 = vst [vmem:[%s1706 + $0x350] sm:$0xff] %v1813
                  %v1815 = vld [vmem:[%s1705 + $0x1b0] sm:$0xff]
                  %1816 = vst [vmem:[%s1706 + $0x360] sm:$0xff] %v1815
                  %v1817 = vld [vmem:[%s1705 + $0x1b8] sm:$0xff]
                  %1818 = vst [vmem:[%s1706 + $0x370] sm:$0xff] %v1817
                  %v1819 = vld [vmem:[%s1705 + $0x1c0] sm:$0xff]
                  %1820 = vst [vmem:[%s1706 + $0x380] sm:$0xff] %v1819
                  %v1821 = vld [vmem:[%s1705 + $0x1c8] sm:$0xff]
                  %1822 = vst [vmem:[%s1706 + $0x390] sm:$0xff] %v1821
                  %v1823 = vld [vmem:[%s1705 + $0x1d0] sm:$0xff]
                  %1824 = vst [vmem:[%s1706 + $0x3a0] sm:$0xff] %v1823
                  %v1825 = vld [vmem:[%s1705 + $0x1d8] sm:$0xff]
                  %1826 = vst [vmem:[%s1706 + $0x3b0] sm:$0xff] %v1825
                  %v1827 = vld [vmem:[%s1705 + $0x1e0] sm:$0xff]
                  %1828 = vst [vmem:[%s1706 + $0x3c0] sm:$0xff] %v1827
                  %v1829 = vld [vmem:[%s1705 + $0x1e8] sm:$0xff]
                  %1830 = vst [vmem:[%s1706 + $0x3d0] sm:$0xff] %v1829
                  %v1831 = vld [vmem:[%s1705 + $0x1f0] sm:$0xff]
                  %1832 = vst [vmem:[%s1706 + $0x3e0] sm:$0xff] %v1831
                  %v1833 = vld [vmem:[%s1705 + $0x1f8] sm:$0xff]
                  %1834 = vst [vmem:[%s1706 + $0x3f0] sm:$0xff] %v1833
                  %v1835 = vld [vmem:[%s1705 + $0x200] sm:$0xff]
                  %1836 = vst [vmem:[%s1706 + $0x400] sm:$0xff] %v1835
                  %v1837 = vld [vmem:[%s1705 + $0x208] sm:$0xff]
                  %1838 = vst [vmem:[%s1706 + $0x410] sm:$0xff] %v1837
                  %v1839 = vld [vmem:[%s1705 + $0x210] sm:$0xff]
                  %1840 = vst [vmem:[%s1706 + $0x420] sm:$0xff] %v1839
                  %v1841 = vld [vmem:[%s1705 + $0x218] sm:$0xff]
                  %1842 = vst [vmem:[%s1706 + $0x430] sm:$0xff] %v1841
                  %v1843 = vld [vmem:[%s1705 + $0x220] sm:$0xff]
                  %1844 = vst [vmem:[%s1706 + $0x440] sm:$0xff] %v1843
                  %v1845 = vld [vmem:[%s1705 + $0x228] sm:$0xff]
                  %1846 = vst [vmem:[%s1706 + $0x450] sm:$0xff] %v1845
                  %v1847 = vld [vmem:[%s1705 + $0x230] sm:$0xff]
                  %1848 = vst [vmem:[%s1706 + $0x460] sm:$0xff] %v1847
                  %v1849 = vld [vmem:[%s1705 + $0x238] sm:$0xff]
                  %1850 = vst [vmem:[%s1706 + $0x470] sm:$0xff] %v1849
                  %v1851 = vld [vmem:[%s1705 + $0x240] sm:$0xff]
                  %1852 = vst [vmem:[%s1706 + $0x480] sm:$0xff] %v1851
                  %v1853 = vld [vmem:[%s1705 + $0x248] sm:$0xff]
                  %1854 = vst [vmem:[%s1706 + $0x490] sm:$0xff] %v1853
                  %v1855 = vld [vmem:[%s1705 + $0x250] sm:$0xff]
                  %1856 = vst [vmem:[%s1706 + $0x4a0] sm:$0xff] %v1855
                  %v1857 = vld [vmem:[%s1705 + $0x258] sm:$0xff]
                  %1858 = vst [vmem:[%s1706 + $0x4b0] sm:$0xff] %v1857
                  %v1859 = vld [vmem:[%s1705 + $0x260] sm:$0xff]
                  %1860 = vst [vmem:[%s1706 + $0x4c0] sm:$0xff] %v1859
                  %v1861 = vld [vmem:[%s1705 + $0x268] sm:$0xff]
                  %1862 = vst [vmem:[%s1706 + $0x4d0] sm:$0xff] %v1861
                  %v1863 = vld [vmem:[%s1705 + $0x270] sm:$0xff]
                  %1864 = vst [vmem:[%s1706 + $0x4e0] sm:$0xff] %v1863
                  %v1865 = vld [vmem:[%s1705 + $0x278] sm:$0xff]
                  %1866 = vst [vmem:[%s1706 + $0x4f0] sm:$0xff] %v1865
                  %v1867 = vld [vmem:[%s1705 + $0x280] sm:$0xff]
                  %1868 = vst [vmem:[%s1706 + $0x500] sm:$0xff] %v1867
                  %v1869 = vld [vmem:[%s1705 + $0x288] sm:$0xff]
                  %1870 = vst [vmem:[%s1706 + $0x510] sm:$0xff] %v1869
                  %v1871 = vld [vmem:[%s1705 + $0x290] sm:$0xff]
                  %1872 = vst [vmem:[%s1706 + $0x520] sm:$0xff] %v1871
                  %v1873 = vld [vmem:[%s1705 + $0x298] sm:$0xff]
                  %1874 = vst [vmem:[%s1706 + $0x530] sm:$0xff] %v1873
                  %v1875 = vld [vmem:[%s1705 + $0x2a0] sm:$0xff]
                  %1876 = vst [vmem:[%s1706 + $0x540] sm:$0xff] %v1875
                  %v1877 = vld [vmem:[%s1705 + $0x2a8] sm:$0xff]
                  %1878 = vst [vmem:[%s1706 + $0x550] sm:$0xff] %v1877
                  %v1879 = vld [vmem:[%s1705 + $0x2b0] sm:$0xff]
                  %1880 = vst [vmem:[%s1706 + $0x560] sm:$0xff] %v1879
                  %v1881 = vld [vmem:[%s1705 + $0x2b8] sm:$0xff]
                  %1882 = vst [vmem:[%s1706 + $0x570] sm:$0xff] %v1881
                  %v1883 = vld [vmem:[%s1705 + $0x2c0] sm:$0xff]
                  %1884 = vst [vmem:[%s1706 + $0x580] sm:$0xff] %v1883
                  %v1885 = vld [vmem:[%s1705 + $0x2c8] sm:$0xff]
                  %1886 = vst [vmem:[%s1706 + $0x590] sm:$0xff] %v1885
                  %v1887 = vld [vmem:[%s1705 + $0x2d0] sm:$0xff]
                  %1888 = vst [vmem:[%s1706 + $0x5a0] sm:$0xff] %v1887
                  %v1889 = vld [vmem:[%s1705 + $0x2d8] sm:$0xff]
                  %1890 = vst [vmem:[%s1706 + $0x5b0] sm:$0xff] %v1889
                  %v1891 = vld [vmem:[%s1705 + $0x2e0] sm:$0xff]
                  %1892 = vst [vmem:[%s1706 + $0x5c0] sm:$0xff] %v1891
                  %v1893 = vld [vmem:[%s1705 + $0x2e8] sm:$0xff]
                  %1894 = vst [vmem:[%s1706 + $0x5d0] sm:$0xff] %v1893
                  %v1895 = vld [vmem:[%s1705 + $0x2f0] sm:$0xff]
                  %1896 = vst [vmem:[%s1706 + $0x5e0] sm:$0xff] %v1895
                  %v1897 = vld [vmem:[%s1705 + $0x2f8] sm:$0xff]
                  %1898 = vst [vmem:[%s1706 + $0x5f0] sm:$0xff] %v1897
                  %v1899 = vld [vmem:[%s1705 + $0x300] sm:$0xff]
                  %1900 = vst [vmem:[%s1706 + $0x600] sm:$0xff] %v1899
                  %v1901 = vld [vmem:[%s1705 + $0x308] sm:$0xff]
                  %1902 = vst [vmem:[%s1706 + $0x610] sm:$0xff] %v1901
                  %v1903 = vld [vmem:[%s1705 + $0x310] sm:$0xff]
                  %1904 = vst [vmem:[%s1706 + $0x620] sm:$0xff] %v1903
                  %v1905 = vld [vmem:[%s1705 + $0x318] sm:$0xff]
                  %1906 = vst [vmem:[%s1706 + $0x630] sm:$0xff] %v1905
                  %v1907 = vld [vmem:[%s1705 + $0x320] sm:$0xff]
                  %1908 = vst [vmem:[%s1706 + $0x640] sm:$0xff] %v1907
                  %v1909 = vld [vmem:[%s1705 + $0x328] sm:$0xff]
                  %1910 = vst [vmem:[%s1706 + $0x650] sm:$0xff] %v1909
                  %v1911 = vld [vmem:[%s1705 + $0x330] sm:$0xff]
                  %1912 = vst [vmem:[%s1706 + $0x660] sm:$0xff] %v1911
                  %v1913 = vld [vmem:[%s1705 + $0x338] sm:$0xff]
                  %1914 = vst [vmem:[%s1706 + $0x670] sm:$0xff] %v1913
                  %v1915 = vld [vmem:[%s1705 + $0x340] sm:$0xff]
                  %1916 = vst [vmem:[%s1706 + $0x680] sm:$0xff] %v1915
                  %v1917 = vld [vmem:[%s1705 + $0x348] sm:$0xff]
                  %1918 = vst [vmem:[%s1706 + $0x690] sm:$0xff] %v1917
                  %v1919 = vld [vmem:[%s1705 + $0x350] sm:$0xff]
                  %1920 = vst [vmem:[%s1706 + $0x6a0] sm:$0xff] %v1919
                  %v1921 = vld [vmem:[%s1705 + $0x358] sm:$0xff]
                  %1922 = vst [vmem:[%s1706 + $0x6b0] sm:$0xff] %v1921
                  %v1923 = vld [vmem:[%s1705 + $0x360] sm:$0xff]
                  %1924 = vst [vmem:[%s1706 + $0x6c0] sm:$0xff] %v1923
                  %v1925 = vld [vmem:[%s1705 + $0x368] sm:$0xff]
                  %1926 = vst [vmem:[%s1706 + $0x6d0] sm:$0xff] %v1925
                  %v1927 = vld [vmem:[%s1705 + $0x370] sm:$0xff]
                  %1928 = vst [vmem:[%s1706 + $0x6e0] sm:$0xff] %v1927
                  %v1929 = vld [vmem:[%s1705 + $0x378] sm:$0xff]
                  %1930 = vst [vmem:[%s1706 + $0x6f0] sm:$0xff] %v1929
                  %v1931 = vld [vmem:[%s1705 + $0x380] sm:$0xff]
                  %1932 = vst [vmem:[%s1706 + $0x700] sm:$0xff] %v1931
                  %v1933 = vld [vmem:[%s1705 + $0x388] sm:$0xff]
                  %1934 = vst [vmem:[%s1706 + $0x710] sm:$0xff] %v1933
                  %v1935 = vld [vmem:[%s1705 + $0x390] sm:$0xff]
                  %1936 = vst [vmem:[%s1706 + $0x720] sm:$0xff] %v1935
                  %v1937 = vld [vmem:[%s1705 + $0x398] sm:$0xff]
                  %1938 = vst [vmem:[%s1706 + $0x730] sm:$0xff] %v1937
                  %v1939 = vld [vmem:[%s1705 + $0x3a0] sm:$0xff]
                  %1940 = vst [vmem:[%s1706 + $0x740] sm:$0xff] %v1939
                  %v1941 = vld [vmem:[%s1705 + $0x3a8] sm:$0xff]
                  %1942 = vst [vmem:[%s1706 + $0x750] sm:$0xff] %v1941
                  %v1943 = vld [vmem:[%s1705 + $0x3b0] sm:$0xff]
                  %1944 = vst [vmem:[%s1706 + $0x760] sm:$0xff] %v1943
                  %v1945 = vld [vmem:[%s1705 + $0x3b8] sm:$0xff]
                  %1946 = vst [vmem:[%s1706 + $0x770] sm:$0xff] %v1945
                  %v1947 = vld [vmem:[%s1705 + $0x3c0] sm:$0xff]
                  %1948 = vst [vmem:[%s1706 + $0x780] sm:$0xff] %v1947
                  %v1949 = vld [vmem:[%s1705 + $0x3c8] sm:$0xff]
                  %1950 = vst [vmem:[%s1706 + $0x790] sm:$0xff] %v1949
                  %v1951 = vld [vmem:[%s1705 + $0x3d0] sm:$0xff]
                  %1952 = vst [vmem:[%s1706 + $0x7a0] sm:$0xff] %v1951
                  %v1953 = vld [vmem:[%s1705 + $0x3d8] sm:$0xff]
                  %1954 = vst [vmem:[%s1706 + $0x7b0] sm:$0xff] %v1953
                  %v1955 = vld [vmem:[%s1705 + $0x3e0] sm:$0xff]
                  %1956 = vst [vmem:[%s1706 + $0x7c0] sm:$0xff] %v1955
                  %v1957 = vld [vmem:[%s1705 + $0x3e8] sm:$0xff]
                  %1958 = vst [vmem:[%s1706 + $0x7d0] sm:$0xff] %v1957
                  %v1959 = vld [vmem:[%s1705 + $0x3f0] sm:$0xff]
                  %1960 = vst [vmem:[%s1706 + $0x7e0] sm:$0xff] %v1959
                  %v1961 = vld [vmem:[%s1705 + $0x3f8] sm:$0xff]
                  %1962 = vst [vmem:[%s1706 + $0x7f0] sm:$0xff] %v1961
                $region98: #{tpu_custom_call.1} parent=92 // loop_footer
                  %s1704 = sadd.s32 1, %s1700
                $region99: #{tpu_custom_call.1} parent=92 // loop_footer_branch
                  %1699 = sbr.rel target = $region95
                $region100: #{tpu_custom_call.1} parent=92 // loop_exit
                  _
              $region93: #{tpu_custom_call.1} parent=77 // pred_fallthru
                _
              // Predicated region
              $region101: #{tpu_custom_call.1} parent=77 // pred_check
                _
              $region102: #{tpu_custom_call.1} parent=77 // pred_check_branch
                %1964 = sbr.rel target = $region104
              $region103: #{tpu_custom_call.1} parent=77 // pred_region
                _
              $region104: #{tpu_custom_call.1} parent=77 // pred_fallthru
                _
            $region78: #{tpu_custom_call.1} parent=73 // pred_fallthru
              _
            // Predicated region
            $region79: #{tpu_custom_call.1} parent=73 // pred_check
              _
            $region80: #{tpu_custom_call.1} parent=73 // pred_check_branch
              %1430 = sbr.rel target = $region82
            $region81: #{tpu_custom_call.1} parent=73 // pred_region
              %s1432 = ssub.s32 256, 1
              loop: start=0, step=1, limit=1
              $region83: #{tpu_custom_call.1} parent=81 // loop_pre_header
                _
              $region84: #{tpu_custom_call.1} parent=81 // loop_header
                %s1434 = sphi 0, %s1438
                %p1435 = scmp.ge.s32.totalorder %s1434, 1
                %s1439 = sphi %s1418, %s1418
                %s1440 = sphi %s1424, %s1424
              $region85: #{tpu_custom_call.1} parent=81 // loop_header_branch
                %1437 = sbr.rel (%p1435) target = $region89
              $region86: #{tpu_custom_call.1} parent=81 // loop_body
                %v1441 = vld [vmem:[%s1439] sm:%s1432]
                %1442 = vst [vmem:[%s1440] sm:%s1432] %v1441
                %v1443 = vld [vmem:[%s1439 + $0x8] sm:%s1432]
                %1444 = vst [vmem:[%s1440 + $0x10] sm:%s1432] %v1443
                %v1445 = vld [vmem:[%s1439 + $0x10] sm:%s1432]
                %1446 = vst [vmem:[%s1440 + $0x20] sm:%s1432] %v1445
                %v1447 = vld [vmem:[%s1439 + $0x18] sm:%s1432]
                %1448 = vst [vmem:[%s1440 + $0x30] sm:%s1432] %v1447
                %v1449 = vld [vmem:[%s1439 + $0x20] sm:%s1432]
                %1450 = vst [vmem:[%s1440 + $0x40] sm:%s1432] %v1449
                %v1451 = vld [vmem:[%s1439 + $0x28] sm:%s1432]
                %1452 = vst [vmem:[%s1440 + $0x50] sm:%s1432] %v1451
                %v1453 = vld [vmem:[%s1439 + $0x30] sm:%s1432]
                %1454 = vst [vmem:[%s1440 + $0x60] sm:%s1432] %v1453
                %v1455 = vld [vmem:[%s1439 + $0x38] sm:%s1432]
                %1456 = vst [vmem:[%s1440 + $0x70] sm:%s1432] %v1455
                %v1457 = vld [vmem:[%s1439 + $0x40] sm:%s1432]
                %1458 = vst [vmem:[%s1440 + $0x80] sm:%s1432] %v1457
                %v1459 = vld [vmem:[%s1439 + $0x48] sm:%s1432]
                %1460 = vst [vmem:[%s1440 + $0x90] sm:%s1432] %v1459
                %v1461 = vld [vmem:[%s1439 + $0x50] sm:%s1432]
                %1462 = vst [vmem:[%s1440 + $0xa0] sm:%s1432] %v1461
                %v1463 = vld [vmem:[%s1439 + $0x58] sm:%s1432]
                %1464 = vst [vmem:[%s1440 + $0xb0] sm:%s1432] %v1463
                %v1465 = vld [vmem:[%s1439 + $0x60] sm:%s1432]
                %1466 = vst [vmem:[%s1440 + $0xc0] sm:%s1432] %v1465
                %v1467 = vld [vmem:[%s1439 + $0x68] sm:%s1432]
                %1468 = vst [vmem:[%s1440 + $0xd0] sm:%s1432] %v1467
                %v1469 = vld [vmem:[%s1439 + $0x70] sm:%s1432]
                %1470 = vst [vmem:[%s1440 + $0xe0] sm:%s1432] %v1469
                %v1471 = vld [vmem:[%s1439 + $0x78] sm:%s1432]
                %1472 = vst [vmem:[%s1440 + $0xf0] sm:%s1432] %v1471
                %v1473 = vld [vmem:[%s1439 + $0x80] sm:%s1432]
                %1474 = vst [vmem:[%s1440 + $0x100] sm:%s1432] %v1473
                %v1475 = vld [vmem:[%s1439 + $0x88] sm:%s1432]
                %1476 = vst [vmem:[%s1440 + $0x110] sm:%s1432] %v1475
                %v1477 = vld [vmem:[%s1439 + $0x90] sm:%s1432]
                %1478 = vst [vmem:[%s1440 + $0x120] sm:%s1432] %v1477
                %v1479 = vld [vmem:[%s1439 + $0x98] sm:%s1432]
                %1480 = vst [vmem:[%s1440 + $0x130] sm:%s1432] %v1479
                %v1481 = vld [vmem:[%s1439 + $0xa0] sm:%s1432]
                %1482 = vst [vmem:[%s1440 + $0x140] sm:%s1432] %v1481
                %v1483 = vld [vmem:[%s1439 + $0xa8] sm:%s1432]
                %1484 = vst [vmem:[%s1440 + $0x150] sm:%s1432] %v1483
                %v1485 = vld [vmem:[%s1439 + $0xb0] sm:%s1432]
                %1486 = vst [vmem:[%s1440 + $0x160] sm:%s1432] %v1485
                %v1487 = vld [vmem:[%s1439 + $0xb8] sm:%s1432]
                %1488 = vst [vmem:[%s1440 + $0x170] sm:%s1432] %v1487
                %v1489 = vld [vmem:[%s1439 + $0xc0] sm:%s1432]
                %1490 = vst [vmem:[%s1440 + $0x180] sm:%s1432] %v1489
                %v1491 = vld [vmem:[%s1439 + $0xc8] sm:%s1432]
                %1492 = vst [vmem:[%s1440 + $0x190] sm:%s1432] %v1491
                %v1493 = vld [vmem:[%s1439 + $0xd0] sm:%s1432]
                %1494 = vst [vmem:[%s1440 + $0x1a0] sm:%s1432] %v1493
                %v1495 = vld [vmem:[%s1439 + $0xd8] sm:%s1432]
                %1496 = vst [vmem:[%s1440 + $0x1b0] sm:%s1432] %v1495
                %v1497 = vld [vmem:[%s1439 + $0xe0] sm:%s1432]
                %1498 = vst [vmem:[%s1440 + $0x1c0] sm:%s1432] %v1497
                %v1499 = vld [vmem:[%s1439 + $0xe8] sm:%s1432]
                %1500 = vst [vmem:[%s1440 + $0x1d0] sm:%s1432] %v1499
                %v1501 = vld [vmem:[%s1439 + $0xf0] sm:%s1432]
                %1502 = vst [vmem:[%s1440 + $0x1e0] sm:%s1432] %v1501
                %v1503 = vld [vmem:[%s1439 + $0xf8] sm:%s1432]
                %1504 = vst [vmem:[%s1440 + $0x1f0] sm:%s1432] %v1503
                %v1505 = vld [vmem:[%s1439 + $0x100] sm:%s1432]
                %1506 = vst [vmem:[%s1440 + $0x200] sm:%s1432] %v1505
                %v1507 = vld [vmem:[%s1439 + $0x108] sm:%s1432]
                %1508 = vst [vmem:[%s1440 + $0x210] sm:%s1432] %v1507
                %v1509 = vld [vmem:[%s1439 + $0x110] sm:%s1432]
                %1510 = vst [vmem:[%s1440 + $0x220] sm:%s1432] %v1509
                %v1511 = vld [vmem:[%s1439 + $0x118] sm:%s1432]
                %1512 = vst [vmem:[%s1440 + $0x230] sm:%s1432] %v1511
                %v1513 = vld [vmem:[%s1439 + $0x120] sm:%s1432]
                %1514 = vst [vmem:[%s1440 + $0x240] sm:%s1432] %v1513
                %v1515 = vld [vmem:[%s1439 + $0x128] sm:%s1432]
                %1516 = vst [vmem:[%s1440 + $0x250] sm:%s1432] %v1515
                %v1517 = vld [vmem:[%s1439 + $0x130] sm:%s1432]
                %1518 = vst [vmem:[%s1440 + $0x260] sm:%s1432] %v1517
                %v1519 = vld [vmem:[%s1439 + $0x138] sm:%s1432]
                %1520 = vst [vmem:[%s1440 + $0x270] sm:%s1432] %v1519
                %v1521 = vld [vmem:[%s1439 + $0x140] sm:%s1432]
                %1522 = vst [vmem:[%s1440 + $0x280] sm:%s1432] %v1521
                %v1523 = vld [vmem:[%s1439 + $0x148] sm:%s1432]
                %1524 = vst [vmem:[%s1440 + $0x290] sm:%s1432] %v1523
                %v1525 = vld [vmem:[%s1439 + $0x150] sm:%s1432]
                %1526 = vst [vmem:[%s1440 + $0x2a0] sm:%s1432] %v1525
                %v1527 = vld [vmem:[%s1439 + $0x158] sm:%s1432]
                %1528 = vst [vmem:[%s1440 + $0x2b0] sm:%s1432] %v1527
                %v1529 = vld [vmem:[%s1439 + $0x160] sm:%s1432]
                %1530 = vst [vmem:[%s1440 + $0x2c0] sm:%s1432] %v1529
                %v1531 = vld [vmem:[%s1439 + $0x168] sm:%s1432]
                %1532 = vst [vmem:[%s1440 + $0x2d0] sm:%s1432] %v1531
                %v1533 = vld [vmem:[%s1439 + $0x170] sm:%s1432]
                %1534 = vst [vmem:[%s1440 + $0x2e0] sm:%s1432] %v1533
                %v1535 = vld [vmem:[%s1439 + $0x178] sm:%s1432]
                %1536 = vst [vmem:[%s1440 + $0x2f0] sm:%s1432] %v1535
                %v1537 = vld [vmem:[%s1439 + $0x180] sm:%s1432]
                %1538 = vst [vmem:[%s1440 + $0x300] sm:%s1432] %v1537
                %v1539 = vld [vmem:[%s1439 + $0x188] sm:%s1432]
                %1540 = vst [vmem:[%s1440 + $0x310] sm:%s1432] %v1539
                %v1541 = vld [vmem:[%s1439 + $0x190] sm:%s1432]
                %1542 = vst [vmem:[%s1440 + $0x320] sm:%s1432] %v1541
                %v1543 = vld [vmem:[%s1439 + $0x198] sm:%s1432]
                %1544 = vst [vmem:[%s1440 + $0x330] sm:%s1432] %v1543
                %v1545 = vld [vmem:[%s1439 + $0x1a0] sm:%s1432]
                %1546 = vst [vmem:[%s1440 + $0x340] sm:%s1432] %v1545
                %v1547 = vld [vmem:[%s1439 + $0x1a8] sm:%s1432]
                %1548 = vst [vmem:[%s1440 + $0x350] sm:%s1432] %v1547
                %v1549 = vld [vmem:[%s1439 + $0x1b0] sm:%s1432]
                %1550 = vst [vmem:[%s1440 + $0x360] sm:%s1432] %v1549
                %v1551 = vld [vmem:[%s1439 + $0x1b8] sm:%s1432]
                %1552 = vst [vmem:[%s1440 + $0x370] sm:%s1432] %v1551
                %v1553 = vld [vmem:[%s1439 + $0x1c0] sm:%s1432]
                %1554 = vst [vmem:[%s1440 + $0x380] sm:%s1432] %v1553
                %v1555 = vld [vmem:[%s1439 + $0x1c8] sm:%s1432]
                %1556 = vst [vmem:[%s1440 + $0x390] sm:%s1432] %v1555
                %v1557 = vld [vmem:[%s1439 + $0x1d0] sm:%s1432]
                %1558 = vst [vmem:[%s1440 + $0x3a0] sm:%s1432] %v1557
                %v1559 = vld [vmem:[%s1439 + $0x1d8] sm:%s1432]
                %1560 = vst [vmem:[%s1440 + $0x3b0] sm:%s1432] %v1559
                %v1561 = vld [vmem:[%s1439 + $0x1e0] sm:%s1432]
                %1562 = vst [vmem:[%s1440 + $0x3c0] sm:%s1432] %v1561
                %v1563 = vld [vmem:[%s1439 + $0x1e8] sm:%s1432]
                %1564 = vst [vmem:[%s1440 + $0x3d0] sm:%s1432] %v1563
                %v1565 = vld [vmem:[%s1439 + $0x1f0] sm:%s1432]
                %1566 = vst [vmem:[%s1440 + $0x3e0] sm:%s1432] %v1565
                %v1567 = vld [vmem:[%s1439 + $0x1f8] sm:%s1432]
                %1568 = vst [vmem:[%s1440 + $0x3f0] sm:%s1432] %v1567
                %v1569 = vld [vmem:[%s1439 + $0x200] sm:%s1432]
                %1570 = vst [vmem:[%s1440 + $0x400] sm:%s1432] %v1569
                %v1571 = vld [vmem:[%s1439 + $0x208] sm:%s1432]
                %1572 = vst [vmem:[%s1440 + $0x410] sm:%s1432] %v1571
                %v1573 = vld [vmem:[%s1439 + $0x210] sm:%s1432]
                %1574 = vst [vmem:[%s1440 + $0x420] sm:%s1432] %v1573
                %v1575 = vld [vmem:[%s1439 + $0x218] sm:%s1432]
                %1576 = vst [vmem:[%s1440 + $0x430] sm:%s1432] %v1575
                %v1577 = vld [vmem:[%s1439 + $0x220] sm:%s1432]
                %1578 = vst [vmem:[%s1440 + $0x440] sm:%s1432] %v1577
                %v1579 = vld [vmem:[%s1439 + $0x228] sm:%s1432]
                %1580 = vst [vmem:[%s1440 + $0x450] sm:%s1432] %v1579
                %v1581 = vld [vmem:[%s1439 + $0x230] sm:%s1432]
                %1582 = vst [vmem:[%s1440 + $0x460] sm:%s1432] %v1581
                %v1583 = vld [vmem:[%s1439 + $0x238] sm:%s1432]
                %1584 = vst [vmem:[%s1440 + $0x470] sm:%s1432] %v1583
                %v1585 = vld [vmem:[%s1439 + $0x240] sm:%s1432]
                %1586 = vst [vmem:[%s1440 + $0x480] sm:%s1432] %v1585
                %v1587 = vld [vmem:[%s1439 + $0x248] sm:%s1432]
                %1588 = vst [vmem:[%s1440 + $0x490] sm:%s1432] %v1587
                %v1589 = vld [vmem:[%s1439 + $0x250] sm:%s1432]
                %1590 = vst [vmem:[%s1440 + $0x4a0] sm:%s1432] %v1589
                %v1591 = vld [vmem:[%s1439 + $0x258] sm:%s1432]
                %1592 = vst [vmem:[%s1440 + $0x4b0] sm:%s1432] %v1591
                %v1593 = vld [vmem:[%s1439 + $0x260] sm:%s1432]
                %1594 = vst [vmem:[%s1440 + $0x4c0] sm:%s1432] %v1593
                %v1595 = vld [vmem:[%s1439 + $0x268] sm:%s1432]
                %1596 = vst [vmem:[%s1440 + $0x4d0] sm:%s1432] %v1595
                %v1597 = vld [vmem:[%s1439 + $0x270] sm:%s1432]
                %1598 = vst [vmem:[%s1440 + $0x4e0] sm:%s1432] %v1597
                %v1599 = vld [vmem:[%s1439 + $0x278] sm:%s1432]
                %1600 = vst [vmem:[%s1440 + $0x4f0] sm:%s1432] %v1599
                %v1601 = vld [vmem:[%s1439 + $0x280] sm:%s1432]
                %1602 = vst [vmem:[%s1440 + $0x500] sm:%s1432] %v1601
                %v1603 = vld [vmem:[%s1439 + $0x288] sm:%s1432]
                %1604 = vst [vmem:[%s1440 + $0x510] sm:%s1432] %v1603
                %v1605 = vld [vmem:[%s1439 + $0x290] sm:%s1432]
                %1606 = vst [vmem:[%s1440 + $0x520] sm:%s1432] %v1605
                %v1607 = vld [vmem:[%s1439 + $0x298] sm:%s1432]
                %1608 = vst [vmem:[%s1440 + $0x530] sm:%s1432] %v1607
                %v1609 = vld [vmem:[%s1439 + $0x2a0] sm:%s1432]
                %1610 = vst [vmem:[%s1440 + $0x540] sm:%s1432] %v1609
                %v1611 = vld [vmem:[%s1439 + $0x2a8] sm:%s1432]
                %1612 = vst [vmem:[%s1440 + $0x550] sm:%s1432] %v1611
                %v1613 = vld [vmem:[%s1439 + $0x2b0] sm:%s1432]
                %1614 = vst [vmem:[%s1440 + $0x560] sm:%s1432] %v1613
                %v1615 = vld [vmem:[%s1439 + $0x2b8] sm:%s1432]
                %1616 = vst [vmem:[%s1440 + $0x570] sm:%s1432] %v1615
                %v1617 = vld [vmem:[%s1439 + $0x2c0] sm:%s1432]
                %1618 = vst [vmem:[%s1440 + $0x580] sm:%s1432] %v1617
                %v1619 = vld [vmem:[%s1439 + $0x2c8] sm:%s1432]
                %1620 = vst [vmem:[%s1440 + $0x590] sm:%s1432] %v1619
                %v1621 = vld [vmem:[%s1439 + $0x2d0] sm:%s1432]
                %1622 = vst [vmem:[%s1440 + $0x5a0] sm:%s1432] %v1621
                %v1623 = vld [vmem:[%s1439 + $0x2d8] sm:%s1432]
                %1624 = vst [vmem:[%s1440 + $0x5b0] sm:%s1432] %v1623
                %v1625 = vld [vmem:[%s1439 + $0x2e0] sm:%s1432]
                %1626 = vst [vmem:[%s1440 + $0x5c0] sm:%s1432] %v1625
                %v1627 = vld [vmem:[%s1439 + $0x2e8] sm:%s1432]
                %1628 = vst [vmem:[%s1440 + $0x5d0] sm:%s1432] %v1627
                %v1629 = vld [vmem:[%s1439 + $0x2f0] sm:%s1432]
                %1630 = vst [vmem:[%s1440 + $0x5e0] sm:%s1432] %v1629
                %v1631 = vld [vmem:[%s1439 + $0x2f8] sm:%s1432]
                %1632 = vst [vmem:[%s1440 + $0x5f0] sm:%s1432] %v1631
                %v1633 = vld [vmem:[%s1439 + $0x300] sm:%s1432]
                %1634 = vst [vmem:[%s1440 + $0x600] sm:%s1432] %v1633
                %v1635 = vld [vmem:[%s1439 + $0x308] sm:%s1432]
                %1636 = vst [vmem:[%s1440 + $0x610] sm:%s1432] %v1635
                %v1637 = vld [vmem:[%s1439 + $0x310] sm:%s1432]
                %1638 = vst [vmem:[%s1440 + $0x620] sm:%s1432] %v1637
                %v1639 = vld [vmem:[%s1439 + $0x318] sm:%s1432]
                %1640 = vst [vmem:[%s1440 + $0x630] sm:%s1432] %v1639
                %v1641 = vld [vmem:[%s1439 + $0x320] sm:%s1432]
                %1642 = vst [vmem:[%s1440 + $0x640] sm:%s1432] %v1641
                %v1643 = vld [vmem:[%s1439 + $0x328] sm:%s1432]
                %1644 = vst [vmem:[%s1440 + $0x650] sm:%s1432] %v1643
                %v1645 = vld [vmem:[%s1439 + $0x330] sm:%s1432]
                %1646 = vst [vmem:[%s1440 + $0x660] sm:%s1432] %v1645
                %v1647 = vld [vmem:[%s1439 + $0x338] sm:%s1432]
                %1648 = vst [vmem:[%s1440 + $0x670] sm:%s1432] %v1647
                %v1649 = vld [vmem:[%s1439 + $0x340] sm:%s1432]
                %1650 = vst [vmem:[%s1440 + $0x680] sm:%s1432] %v1649
                %v1651 = vld [vmem:[%s1439 + $0x348] sm:%s1432]
                %1652 = vst [vmem:[%s1440 + $0x690] sm:%s1432] %v1651
                %v1653 = vld [vmem:[%s1439 + $0x350] sm:%s1432]
                %1654 = vst [vmem:[%s1440 + $0x6a0] sm:%s1432] %v1653
                %v1655 = vld [vmem:[%s1439 + $0x358] sm:%s1432]
                %1656 = vst [vmem:[%s1440 + $0x6b0] sm:%s1432] %v1655
                %v1657 = vld [vmem:[%s1439 + $0x360] sm:%s1432]
                %1658 = vst [vmem:[%s1440 + $0x6c0] sm:%s1432] %v1657
                %v1659 = vld [vmem:[%s1439 + $0x368] sm:%s1432]
                %1660 = vst [vmem:[%s1440 + $0x6d0] sm:%s1432] %v1659
                %v1661 = vld [vmem:[%s1439 + $0x370] sm:%s1432]
                %1662 = vst [vmem:[%s1440 + $0x6e0] sm:%s1432] %v1661
                %v1663 = vld [vmem:[%s1439 + $0x378] sm:%s1432]
                %1664 = vst [vmem:[%s1440 + $0x6f0] sm:%s1432] %v1663
                %v1665 = vld [vmem:[%s1439 + $0x380] sm:%s1432]
                %1666 = vst [vmem:[%s1440 + $0x700] sm:%s1432] %v1665
                %v1667 = vld [vmem:[%s1439 + $0x388] sm:%s1432]
                %1668 = vst [vmem:[%s1440 + $0x710] sm:%s1432] %v1667
                %v1669 = vld [vmem:[%s1439 + $0x390] sm:%s1432]
                %1670 = vst [vmem:[%s1440 + $0x720] sm:%s1432] %v1669
                %v1671 = vld [vmem:[%s1439 + $0x398] sm:%s1432]
                %1672 = vst [vmem:[%s1440 + $0x730] sm:%s1432] %v1671
                %v1673 = vld [vmem:[%s1439 + $0x3a0] sm:%s1432]
                %1674 = vst [vmem:[%s1440 + $0x740] sm:%s1432] %v1673
                %v1675 = vld [vmem:[%s1439 + $0x3a8] sm:%s1432]
                %1676 = vst [vmem:[%s1440 + $0x750] sm:%s1432] %v1675
                %v1677 = vld [vmem:[%s1439 + $0x3b0] sm:%s1432]
                %1678 = vst [vmem:[%s1440 + $0x760] sm:%s1432] %v1677
                %v1679 = vld [vmem:[%s1439 + $0x3b8] sm:%s1432]
                %1680 = vst [vmem:[%s1440 + $0x770] sm:%s1432] %v1679
                %v1681 = vld [vmem:[%s1439 + $0x3c0] sm:%s1432]
                %1682 = vst [vmem:[%s1440 + $0x780] sm:%s1432] %v1681
                %v1683 = vld [vmem:[%s1439 + $0x3c8] sm:%s1432]
                %1684 = vst [vmem:[%s1440 + $0x790] sm:%s1432] %v1683
                %v1685 = vld [vmem:[%s1439 + $0x3d0] sm:%s1432]
                %1686 = vst [vmem:[%s1440 + $0x7a0] sm:%s1432] %v1685
                %v1687 = vld [vmem:[%s1439 + $0x3d8] sm:%s1432]
                %1688 = vst [vmem:[%s1440 + $0x7b0] sm:%s1432] %v1687
                %v1689 = vld [vmem:[%s1439 + $0x3e0] sm:%s1432]
                %1690 = vst [vmem:[%s1440 + $0x7c0] sm:%s1432] %v1689
                %v1691 = vld [vmem:[%s1439 + $0x3e8] sm:%s1432]
                %1692 = vst [vmem:[%s1440 + $0x7d0] sm:%s1432] %v1691
                %v1693 = vld [vmem:[%s1439 + $0x3f0] sm:%s1432]
                %1694 = vst [vmem:[%s1440 + $0x7e0] sm:%s1432] %v1693
                %v1695 = vld [vmem:[%s1439 + $0x3f8] sm:%s1432]
                %1696 = vst [vmem:[%s1440 + $0x7f0] sm:%s1432] %v1695
              $region87: #{tpu_custom_call.1} parent=81 // loop_footer
                %s1438 = sadd.s32 1, %s1434
              $region88: #{tpu_custom_call.1} parent=81 // loop_footer_branch
                %1433 = sbr.rel target = $region84
              $region89: #{tpu_custom_call.1} parent=81 // loop_exit
                _
            $region82: #{tpu_custom_call.1} parent=73 // pred_fallthru
              _
          $region74: #{tpu_custom_call.1} parent=69 // pred_fallthru
            _
          %1965 = vnop
        $region70: #{tpu_custom_call.1} parent=61 // pred_fallthru
          _
      $region62: #{tpu_custom_call.1} parent=5 // pred_fallthru
        _
      %p1966 = scmp.le.s32.totalorder 2, %s8
      // Predicated region
      $region105: #{tpu_custom_call.1} parent=5 // pred_check
        %p1967 = pneg %p1966
      $region106: #{tpu_custom_call.1} parent=5 // pred_check_branch
        %1969 = sbr.rel (%p1967) target = $region108
      $region107: #{tpu_custom_call.1} parent=5 // pred_region
        %s1970 = ssub.s32 %s8, 2
        // Predicated region
        $region109: #{tpu_custom_call.1} parent=107 // pred_check
          %p1971 = pneg %p103
        $region110: #{tpu_custom_call.1} parent=107 // pred_check_branch
          %1973 = sbr.rel (%p1971) target = $region112
        $region111: #{tpu_custom_call.1} parent=107 // pred_region
          %s1974 = sand.u32 %s88, 1
          %s1975 = sand.u32 %s88, 1
          %s1976 = smul.addr %s1975, 1024
          %s1977 = scalar_lea.vmem [#allocation3], %s1976
        $region112: #{tpu_custom_call.1} parent=107 // pred_fallthru
          _
      $region108: #{tpu_custom_call.1} parent=5 // pred_fallthru
        _
    $region6: #{tpu_custom_call.1} parent=1 // loop_footer
      %s12 = sadd.s32 1, %s8
    $region7: #{tpu_custom_call.1} parent=1 // loop_footer_branch
      %7 = sbr.rel target = $region3
    $region8: #{tpu_custom_call.1} parent=1 // loop_exit
      _

</llo_original>
